<compile_context>
chip_gen: v7x
topology: tpu7x:2x2x1
jax: 0.10.0
libtpu: 0.0.40
codegen_flags: <defaults>
</compile_context>

<pallas_src>
import math

import jax
import jax.numpy as jnp
from jax import lax
from jax.experimental import pallas as pl
from jax.experimental.pallas import tpu as pltpu  # noqa: F401  (TPU backend)

# ---- "__C" config (small, synthetic) ----
HIDDEN_SIZE = 32
MULTI_HEAD = 4
HEAD_DIM = HIDDEN_SIZE // MULTI_HEAD
DROPOUT_R = 0.1  # dropout is identity at inference; omitted in-kernel
BATCH = 2
SEQ = 8


def comp_mhatt_kernel(k_ref, q_ref, fill_ref, bias_ref,
                      wkt_ref, bk_ref, wqt_ref, bq_ref, wmt_ref, bm_ref,
                      out_ref):
    """Fused projections + block-diagonal masked MHA + merge, all rows at once."""
    k = k_ref[...]                       # (BL, H)
    q = q_ref[...]                       # (BL, H)
    fill = fill_ref[...] > 0.0           # (BL, BL)  True => masked_fill(-1e9)
    bias = bias_ref[...]                 # (BL, BL)  0 within batch, -2e9 across

    # linear_k / linear_q  (v := k projection; q projection pre-scaled by 1/sqrt(dk))
    kp = jnp.dot(k, wkt_ref[...], preferred_element_type=jnp.float32) + bk_ref[...]
    qp = jnp.dot(q, wqt_ref[...], preferred_element_type=jnp.float32) + bq_ref[...]

    wmt = wmt_ref[...]                   # (H, H), already (in, out) layout
    acc = jnp.zeros_like(qp)             # (BL, H) merged-output accumulator

    for h in range(MULTI_HEAD):          # static, unrolled head loop
        lo = h * HEAD_DIM
        q_h = qp[:, lo:lo + HEAD_DIM]    # (BL, dk)
        k_h = kp[:, lo:lo + HEAD_DIM]    # (BL, dk); value == key projection

        # scores = q_h @ k_h.T without materializing a transpose (contract last dims)
        scores = lax.dot_general(q_h, k_h, (((1,), (1,)), ((), ())),
                                 preferred_element_type=jnp.float32)
        scores = jnp.where(fill, -1000000000.0, scores) + bias

        m = jnp.max(scores, axis=-1, keepdims=True)
        e = jnp.exp(scores - m)
        att = e * pl.reciprocal(jnp.sum(e, axis=-1, keepdims=True), approx=False)
        # TODO(synk): dropout(att_map) omitted (inference / eval mode => identity)

        av = jnp.dot(att, k_h, preferred_element_type=jnp.float32)        # (BL, dk)
        acc = acc + jnp.dot(av, wmt[lo:lo + HEAD_DIM, :],
                            preferred_element_type=jnp.float32)           # fused merge

    out_ref[...] = (acc + bm_ref[...]).astype(out_ref.dtype)


def comp_mhatt(v, k, q, mask, params):
    """Pallas wrapper.  Accepts (v, k, q, mask) like the module; v is unused."""
    del v  # module sets v = linear_k(k)
    B, L, H = q.shape
    BL = B * L
    wk, bk, wq, bq, wm, bm = params
    inv_sqrt_dk = 1.0 / math.sqrt(HEAD_DIM)

    # Pre-transpose nn.Linear weights to (in, out); fold 1/sqrt(dk) into the q proj.
    wkt = wk.T
    wqt = (wq * inv_sqrt_dk).T
    wmt = wm.T
    bk2 = bk.reshape(1, H)
    bq2 = (bq * inv_sqrt_dk).reshape(1, H)
    bm2 = bm.reshape(1, H)

    # Flatten batch into rows (free, contiguous).
    k2 = k.reshape(BL, H)
    q2 = q.reshape(BL, H)

    # Block-diagonal mask material (built once in the wrapper):
    #   fill[i, j] = 1.0 where key j is a masked position of query i's own batch
    #                (exact masked_fill(-1e9) semantics in-kernel)
    #   bias[i, j] = 0 within the same batch, -2e9 across batches (exp underflows
    #                to exactly 0 after the row-max shift, so cross-batch keys
    #                contribute nothing)
    key_masked = mask.reshape(BL)                                   # 1.0 == masked
    row_batch = jnp.arange(BL, dtype=jnp.int32) // L
    same_batch = row_batch[:, None] == row_batch[None, :]
    fill = jnp.where(same_batch, key_masked[None, :], 0.0).astype(jnp.float32)
    bias = jnp.where(same_batch, 0.0, -2.0e9).astype(jnp.float32)

    out = pl.pallas_call(
        comp_mhatt_kernel,
        out_shape=jax.ShapeDtypeStruct((BL, H), jnp.float32),
    )(k2, q2, fill, bias, wkt, bk2, wqt, bq2, wmt, bm2)
    return out.reshape(B, L, H)


def reference(v, k, q, mask, params):
    """Pure-JAX reference mirroring the PyTorch forward exactly."""
    del v
    wk, bk, wq, bq, wm, bm = params
    B, L, H = q.shape
    kp = k @ wk.T + bk
    qp = q @ wq.T + bq
    kp_h = kp.reshape(B, L, MULTI_HEAD, HEAD_DIM).transpose(0, 2, 1, 3)
    qp_h = qp.reshape(B, L, MULTI_HEAD, HEAD_DIM).transpose(0, 2, 1, 3)
    scores = jnp.einsum('bhqd,bhkd->bhqk', qp_h, kp_h) / math.sqrt(HEAD_DIM)
    scores = jnp.where(mask > 0, -1000000000.0, scores)
    att = jax.nn.softmax(scores, axis=-1)
    out = jnp.einsum('bhqk,bhkd->bhqd', att, kp_h)
    out = out.transpose(0, 2, 1, 3).reshape(B, L, H)
    return out @ wm.T + bm


def init_params(key, hidden):
    """Deterministic synthetic nn.Linear params (PyTorch (out, in) layout)."""
    ks = jax.random.split(key, 6)
    bound = 1.0 / math.sqrt(hidden)
    wk = jax.random.uniform(ks[0], (hidden, hidden), jnp.float32, -bound, bound)
    bk = jax.random.uniform(ks[1], (hidden,), jnp.float32, -bound, bound)
    wq = jax.random.uniform(ks[2], (hidden, hidden), jnp.float32, -bound, bound)
    bq = jax.random.uniform(ks[3], (hidden,), jnp.float32, -bound, bound)
    wm = jax.random.uniform(ks[4], (hidden, hidden), jnp.float32, -bound, bound)
    bm = jax.random.uniform(ks[5], (hidden,), jnp.float32, -bound, bound)
    return wk, bk, wq, bq, wm, bm


if __name__ == "__main__":
    key = jax.random.PRNGKey(0)
    k_in_key, k_q_key, k_v_key, k_m_key, k_p_key = jax.random.split(key, 5)

    k_in = jax.random.normal(k_in_key, (BATCH, SEQ, HIDDEN_SIZE), jnp.float32)
    q_in = jax.random.normal(k_q_key, (BATCH, SEQ, HIDDEN_SIZE), jnp.float32)
    v_in = jax.random.normal(k_v_key, (BATCH, SEQ, HIDDEN_SIZE), jnp.float32)  # unused (v := k)
    # mask: 1.0 == masked position (bool semantics of masked_fill)
    mask = jax.random.bernoulli(k_m_key, p=0.25, shape=(BATCH, 1, 1, SEQ)).astype(jnp.float32)

    params = init_params(k_p_key, HIDDEN_SIZE)

    out = jax.block_until_ready(comp_mhatt(v_in, k_in, q_in, mask, params))

    ref = reference(v_in, k_in, q_in, mask, params)
    assert out.shape == (BATCH, SEQ, HIDDEN_SIZE)
    assert jnp.allclose(out, ref, atol=1e-4, rtol=1e-4), "mismatch vs reference"

    print("KERNEL_OK")
</pallas_src>

<mosaic_0001>
module attributes {stable_mosaic.version = 11 : i64} {
  func.func @comp_mhatt_kernel(%arg0: memref<16x32xf32, #tpu.memory_space<vmem>>, %arg1: memref<16x32xf32, #tpu.memory_space<vmem>>, %arg2: memref<16x16xf32, #tpu.memory_space<vmem>>, %arg3: memref<16x16xf32, #tpu.memory_space<vmem>>, %arg4: memref<32x32xf32, #tpu.memory_space<vmem>>, %arg5: memref<1x32xf32, #tpu.memory_space<vmem>>, %arg6: memref<32x32xf32, #tpu.memory_space<vmem>>, %arg7: memref<1x32xf32, #tpu.memory_space<vmem>>, %arg8: memref<32x32xf32, #tpu.memory_space<vmem>>, %arg9: memref<1x32xf32, #tpu.memory_space<vmem>>, %arg10: memref<16x32xf32, #tpu.memory_space<vmem>>) attributes {dimension_semantics = [], scalar_prefetch = 0 : i64, scratch_operands = 0 : i64, tpu.core_type = #tpu.core_type<tc>} {
    %c0 = arith.constant 0 : index
    %c0_0 = arith.constant 0 : index
    %0 = vector.load %arg0[%c0, %c0_0] : memref<16x32xf32, #tpu.memory_space<vmem>>, vector<16x32xf32>
    %c0_1 = arith.constant 0 : index
    %c0_2 = arith.constant 0 : index
    %1 = vector.load %arg1[%c0_1, %c0_2] : memref<16x32xf32, #tpu.memory_space<vmem>>, vector<16x32xf32>
    %c0_3 = arith.constant 0 : index
    %c0_4 = arith.constant 0 : index
    %2 = vector.load %arg2[%c0_3, %c0_4] : memref<16x16xf32, #tpu.memory_space<vmem>>, vector<16x16xf32>
    %cst = arith.constant 0.000000e+00 : f32
    %3 = vector.broadcast %cst : f32 to vector<16x16xf32>
    %4 = arith.cmpf ogt, %2, %3 : vector<16x16xf32>
    %c0_5 = arith.constant 0 : index
    %c0_6 = arith.constant 0 : index
    %5 = vector.load %arg3[%c0_5, %c0_6] : memref<16x16xf32, #tpu.memory_space<vmem>>, vector<16x16xf32>
    %c0_7 = arith.constant 0 : index
    %c0_8 = arith.constant 0 : index
    %6 = vector.load %arg4[%c0_7, %c0_8] : memref<32x32xf32, #tpu.memory_space<vmem>>, vector<32x32xf32>
    %cst_9 = arith.constant dense<0.000000e+00> : vector<16x32xf32>
    %7 = tpu.matmul %0, %6, %cst_9 {dimension_numbers = #tpu.dot_dimension_numbers<[1], [0], [0], [1], [0, 0, 1, 1], [], []>} : vector<16x32xf32>, vector<32x32xf32>, vector<16x32xf32> -> vector<16x32xf32>
    %c0_10 = arith.constant 0 : index
    %c0_11 = arith.constant 0 : index
    %8 = vector.load %arg5[%c0_10, %c0_11] : memref<1x32xf32, #tpu.memory_space<vmem>>, vector<1x32xf32>
    %9 = vector.broadcast %8 : vector<1x32xf32> to vector<16x32xf32>
    %10 = arith.addf %7, %9 : vector<16x32xf32>
    %c0_12 = arith.constant 0 : index
    %c0_13 = arith.constant 0 : index
    %11 = vector.load %arg6[%c0_12, %c0_13] : memref<32x32xf32, #tpu.memory_space<vmem>>, vector<32x32xf32>
    %cst_14 = arith.constant dense<0.000000e+00> : vector<16x32xf32>
    %12 = tpu.matmul %1, %11, %cst_14 {dimension_numbers = #tpu.dot_dimension_numbers<[1], [0], [0], [1], [0, 0, 1, 1], [], []>} : vector<16x32xf32>, vector<32x32xf32>, vector<16x32xf32> -> vector<16x32xf32>
    %c0_15 = arith.constant 0 : index
    %c0_16 = arith.constant 0 : index
    %13 = vector.load %arg7[%c0_15, %c0_16] : memref<1x32xf32, #tpu.memory_space<vmem>>, vector<1x32xf32>
    %14 = vector.broadcast %13 : vector<1x32xf32> to vector<16x32xf32>
    %15 = arith.addf %12, %14 : vector<16x32xf32>
    %c0_17 = arith.constant 0 : index
    %c0_18 = arith.constant 0 : index
    %16 = vector.load %arg8[%c0_17, %c0_18] : memref<32x32xf32, #tpu.memory_space<vmem>>, vector<32x32xf32>
    %cst_19 = arith.constant 0.000000e+00 : f32
    %17 = vector.broadcast %cst_19 : f32 to vector<16x32xf32>
    %18 = vector.extract_strided_slice %15 {offsets = [0, 0], sizes = [16, 8], strides = [1, 1]} : vector<16x32xf32> to vector<16x8xf32>
    %19 = vector.extract_strided_slice %10 {offsets = [0, 0], sizes = [16, 8], strides = [1, 1]} : vector<16x32xf32> to vector<16x8xf32>
    %cst_20 = arith.constant dense<0.000000e+00> : vector<16x16xf32>
    %20 = tpu.matmul %18, %19, %cst_20 {dimension_numbers = #tpu.dot_dimension_numbers<[1], [1], [0], [0], [0, 0, 1, 0], [], []>} : vector<16x8xf32>, vector<16x8xf32>, vector<16x16xf32> -> vector<16x16xf32>
    %cst_21 = arith.constant -1.000000e+09 : f32
    %21 = vector.broadcast %cst_21 : f32 to vector<16x16xf32>
    %22 = arith.select %4, %21, %20 : vector<16x16xi1>, vector<16x16xf32>
    %23 = arith.addf %22, %5 : vector<16x16xf32>
    %cst_22 = arith.constant dense<0xFF800000> : vector<16xf32>
    %24 = vector.multi_reduction <maximumf>, %23, %cst_22 [1] : vector<16x16xf32> to vector<16xf32>
    %25 = vector.shape_cast %24 : vector<16xf32> to vector<16x1xf32>
    %26 = vector.broadcast %25 : vector<16x1xf32> to vector<16x16xf32>
    %27 = arith.subf %23, %26 : vector<16x16xf32>
    %28 = math.exp %27 : vector<16x16xf32>
    %cst_23 = arith.constant dense<0.000000e+00> : vector<16xf32>
    %29 = vector.multi_reduction <add>, %28, %cst_23 [1] : vector<16x16xf32> to vector<16xf32>
    %30 = vector.shape_cast %29 : vector<16xf32> to vector<16x1xf32>
    %31 = tpu.reciprocal %30 : vector<16x1xf32> -> vector<16x1xf32>
    %32 = vector.broadcast %31 : vector<16x1xf32> to vector<16x16xf32>
    %33 = arith.mulf %28, %32 : vector<16x16xf32>
    %cst_24 = arith.constant dense<0.000000e+00> : vector<16x8xf32>
    %34 = tpu.matmul %33, %19, %cst_24 {dimension_numbers = #tpu.dot_dimension_numbers<[1], [0], [0], [1], [0, 0, 1, 1], [], []>} : vector<16x16xf32>, vector<16x8xf32>, vector<16x8xf32> -> vector<16x8xf32>
    %35 = vector.extract_strided_slice %16 {offsets = [0, 0], sizes = [8, 32], strides = [1, 1]} : vector<32x32xf32> to vector<8x32xf32>
    %cst_25 = arith.constant dense<0.000000e+00> : vector<16x32xf32>
    %36 = tpu.matmul %34, %35, %cst_25 {dimension_numbers = #tpu.dot_dimension_numbers<[1], [0], [0], [1], [0, 0, 1, 1], [], []>} : vector<16x8xf32>, vector<8x32xf32>, vector<16x32xf32> -> vector<16x32xf32>
    %37 = arith.addf %17, %36 : vector<16x32xf32>
    %38 = vector.extract_strided_slice %15 {offsets = [0, 8], sizes = [16, 8], strides = [1, 1]} : vector<16x32xf32> to vector<16x8xf32>
    %39 = vector.extract_strided_slice %10 {offsets = [0, 8], sizes = [16, 8], strides = [1, 1]} : vector<16x32xf32> to vector<16x8xf32>
    %cst_26 = arith.constant dense<0.000000e+00> : vector<16x16xf32>
    %40 = tpu.matmul %38, %39, %cst_26 {dimension_numbers = #tpu.dot_dimension_numbers<[1], [1], [0], [0], [0, 0, 1, 0], [], []>} : vector<16x8xf32>, vector<16x8xf32>, vector<16x16xf32> -> vector<16x16xf32>
    %cst_27 = arith.constant -1.000000e+09 : f32
    %41 = vector.broadcast %cst_27 : f32 to vector<16x16xf32>
    %42 = arith.select %4, %41, %40 : vector<16x16xi1>, vector<16x16xf32>
    %43 = arith.addf %42, %5 : vector<16x16xf32>
    %cst_28 = arith.constant dense<0xFF800000> : vector<16xf32>
    %44 = vector.multi_reduction <maximumf>, %43, %cst_28 [1] : vector<16x16xf32> to vector<16xf32>
    %45 = vector.shape_cast %44 : vector<16xf32> to vector<16x1xf32>
    %46 = vector.broadcast %45 : vector<16x1xf32> to vector<16x16xf32>
    %47 = arith.subf %43, %46 : vector<16x16xf32>
    %48 = math.exp %47 : vector<16x16xf32>
    %cst_29 = arith.constant dense<0.000000e+00> : vector<16xf32>
    %49 = vector.multi_reduction <add>, %48, %cst_29 [1] : vector<16x16xf32> to vector<16xf32>
    %50 = vector.shape_cast %49 : vector<16xf32> to vector<16x1xf32>
    %51 = tpu.reciprocal %50 : vector<16x1xf32> -> vector<16x1xf32>
    %52 = vector.broadcast %51 : vector<16x1xf32> to vector<16x16xf32>
    %53 = arith.mulf %48, %52 : vector<16x16xf32>
    %cst_30 = arith.constant dense<0.000000e+00> : vector<16x8xf32>
    %54 = tpu.matmul %53, %39, %cst_30 {dimension_numbers = #tpu.dot_dimension_numbers<[1], [0], [0], [1], [0, 0, 1, 1], [], []>} : vector<16x16xf32>, vector<16x8xf32>, vector<16x8xf32> -> vector<16x8xf32>
    %55 = vector.extract_strided_slice %16 {offsets = [8, 0], sizes = [8, 32], strides = [1, 1]} : vector<32x32xf32> to vector<8x32xf32>
    %cst_31 = arith.constant dense<0.000000e+00> : vector<16x32xf32>
    %56 = tpu.matmul %54, %55, %cst_31 {dimension_numbers = #tpu.dot_dimension_numbers<[1], [0], [0], [1], [0, 0, 1, 1], [], []>} : vector<16x8xf32>, vector<8x32xf32>, vector<16x32xf32> -> vector<16x32xf32>
    %57 = arith.addf %37, %56 : vector<16x32xf32>
    %58 = vector.extract_strided_slice %15 {offsets = [0, 16], sizes = [16, 8], strides = [1, 1]} : vector<16x32xf32> to vector<16x8xf32>
    %59 = vector.extract_strided_slice %10 {offsets = [0, 16], sizes = [16, 8], strides = [1, 1]} : vector<16x32xf32> to vector<16x8xf32>
    %cst_32 = arith.constant dense<0.000000e+00> : vector<16x16xf32>
    %60 = tpu.matmul %58, %59, %cst_32 {dimension_numbers = #tpu.dot_dimension_numbers<[1], [1], [0], [0], [0, 0, 1, 0], [], []>} : vector<16x8xf32>, vector<16x8xf32>, vector<16x16xf32> -> vector<16x16xf32>
    %cst_33 = arith.constant -1.000000e+09 : f32
    %61 = vector.broadcast %cst_33 : f32 to vector<16x16xf32>
    %62 = arith.select %4, %61, %60 : vector<16x16xi1>, vector<16x16xf32>
    %63 = arith.addf %62, %5 : vector<16x16xf32>
    %cst_34 = arith.constant dense<0xFF800000> : vector<16xf32>
    %64 = vector.multi_reduction <maximumf>, %63, %cst_34 [1] : vector<16x16xf32> to vector<16xf32>
    %65 = vector.shape_cast %64 : vector<16xf32> to vector<16x1xf32>
    %66 = vector.broadcast %65 : vector<16x1xf32> to vector<16x16xf32>
    %67 = arith.subf %63, %66 : vector<16x16xf32>
    %68 = math.exp %67 : vector<16x16xf32>
    %cst_35 = arith.constant dense<0.000000e+00> : vector<16xf32>
    %69 = vector.multi_reduction <add>, %68, %cst_35 [1] : vector<16x16xf32> to vector<16xf32>
    %70 = vector.shape_cast %69 : vector<16xf32> to vector<16x1xf32>
    %71 = tpu.reciprocal %70 : vector<16x1xf32> -> vector<16x1xf32>
    %72 = vector.broadcast %71 : vector<16x1xf32> to vector<16x16xf32>
    %73 = arith.mulf %68, %72 : vector<16x16xf32>
    %cst_36 = arith.constant dense<0.000000e+00> : vector<16x8xf32>
    %74 = tpu.matmul %73, %59, %cst_36 {dimension_numbers = #tpu.dot_dimension_numbers<[1], [0], [0], [1], [0, 0, 1, 1], [], []>} : vector<16x16xf32>, vector<16x8xf32>, vector<16x8xf32> -> vector<16x8xf32>
    %75 = vector.extract_strided_slice %16 {offsets = [16, 0], sizes = [8, 32], strides = [1, 1]} : vector<32x32xf32> to vector<8x32xf32>
    %cst_37 = arith.constant dense<0.000000e+00> : vector<16x32xf32>
    %76 = tpu.matmul %74, %75, %cst_37 {dimension_numbers = #tpu.dot_dimension_numbers<[1], [0], [0], [1], [0, 0, 1, 1], [], []>} : vector<16x8xf32>, vector<8x32xf32>, vector<16x32xf32> -> vector<16x32xf32>
    %77 = arith.addf %57, %76 : vector<16x32xf32>
    %78 = vector.extract_strided_slice %15 {offsets = [0, 24], sizes = [16, 8], strides = [1, 1]} : vector<16x32xf32> to vector<16x8xf32>
    %79 = vector.extract_strided_slice %10 {offsets = [0, 24], sizes = [16, 8], strides = [1, 1]} : vector<16x32xf32> to vector<16x8xf32>
    %cst_38 = arith.constant dense<0.000000e+00> : vector<16x16xf32>
    %80 = tpu.matmul %78, %79, %cst_38 {dimension_numbers = #tpu.dot_dimension_numbers<[1], [1], [0], [0], [0, 0, 1, 0], [], []>} : vector<16x8xf32>, vector<16x8xf32>, vector<16x16xf32> -> vector<16x16xf32>
    %cst_39 = arith.constant -1.000000e+09 : f32
    %81 = vector.broadcast %cst_39 : f32 to vector<16x16xf32>
    %82 = arith.select %4, %81, %80 : vector<16x16xi1>, vector<16x16xf32>
    %83 = arith.addf %82, %5 : vector<16x16xf32>
    %cst_40 = arith.constant dense<0xFF800000> : vector<16xf32>
    %84 = vector.multi_reduction <maximumf>, %83, %cst_40 [1] : vector<16x16xf32> to vector<16xf32>
    %85 = vector.shape_cast %84 : vector<16xf32> to vector<16x1xf32>
    %86 = vector.broadcast %85 : vector<16x1xf32> to vector<16x16xf32>
    %87 = arith.subf %83, %86 : vector<16x16xf32>
    %88 = math.exp %87 : vector<16x16xf32>
    %cst_41 = arith.constant dense<0.000000e+00> : vector<16xf32>
    %89 = vector.multi_reduction <add>, %88, %cst_41 [1] : vector<16x16xf32> to vector<16xf32>
    %90 = vector.shape_cast %89 : vector<16xf32> to vector<16x1xf32>
    %91 = tpu.reciprocal %90 : vector<16x1xf32> -> vector<16x1xf32>
    %92 = vector.broadcast %91 : vector<16x1xf32> to vector<16x16xf32>
    %93 = arith.mulf %88, %92 : vector<16x16xf32>
    %cst_42 = arith.constant dense<0.000000e+00> : vector<16x8xf32>
    %94 = tpu.matmul %93, %79, %cst_42 {dimension_numbers = #tpu.dot_dimension_numbers<[1], [0], [0], [1], [0, 0, 1, 1], [], []>} : vector<16x16xf32>, vector<16x8xf32>, vector<16x8xf32> -> vector<16x8xf32>
    %95 = vector.extract_strided_slice %16 {offsets = [24, 0], sizes = [8, 32], strides = [1, 1]} : vector<32x32xf32> to vector<8x32xf32>
    %cst_43 = arith.constant dense<0.000000e+00> : vector<16x32xf32>
    %96 = tpu.matmul %94, %95, %cst_43 {dimension_numbers = #tpu.dot_dimension_numbers<[1], [0], [0], [1], [0, 0, 1, 1], [], []>} : vector<16x8xf32>, vector<8x32xf32>, vector<16x32xf32> -> vector<16x32xf32>
    %97 = arith.addf %77, %96 : vector<16x32xf32>
    %c0_44 = arith.constant 0 : index
    %c0_45 = arith.constant 0 : index
    %98 = vector.load %arg9[%c0_44, %c0_45] : memref<1x32xf32, #tpu.memory_space<vmem>>, vector<1x32xf32>
    %99 = vector.broadcast %98 : vector<1x32xf32> to vector<16x32xf32>
    %100 = arith.addf %97, %99 : vector<16x32xf32>
    %c0_46 = arith.constant 0 : index
    %c0_47 = arith.constant 0 : index
    %101 = vector.load %arg10[%c0_46, %c0_47] : memref<16x32xf32, #tpu.memory_space<vmem>>, vector<16x32xf32>
    tpu.vector_store %arg10[%c0_46, %c0_47], %100 {strides = array<i32>} : memref<16x32xf32, #tpu.memory_space<vmem>>, vector<16x32xf32>,
    return
  }
}

</mosaic_0001>

<llo_original>
// kernel: tpu_custom_call.1
$region0: #{tpu_custom_call.1}
  #allocation0 [shape = 'u32[]', space=smem, size = 0x4, offset = 0x4, fixed_abs, tag = 'smem constant byte address 0x4 - core index']
  #allocation1 [shape = 'u32[144,128]{1,0:T(1,128)}', space=vmem, size = 0x12000, scoped, tag = 'internal scratch']
  %s0 = inlined_call_operand.hbm [shape: f32[16,32], index: 0, kind: input, shape index: {}]
  %s1 = inlined_call_operand.hbm [shape: f32[16,32], index: 1, kind: input, shape index: {}]
  %s2 = inlined_call_operand.hbm [shape: f32[16,16], index: 2, kind: input, shape index: {}]
  %s3 = inlined_call_operand.hbm [shape: f32[16,16], index: 3, kind: input, shape index: {}]
  %s4 = inlined_call_operand.hbm [shape: f32[32,32], index: 4, kind: input, shape index: {}]
  %s5 = inlined_call_operand.vmem [shape: f32[1,32], index: 5, kind: input, shape index: {}]
  %s6 = inlined_call_operand.hbm [shape: f32[32,32], index: 6, kind: input, shape index: {}]
  %s7 = inlined_call_operand.vmem [shape: f32[1,32], index: 7, kind: input, shape index: {}]
  %s8 = inlined_call_operand.hbm [shape: f32[32,32], index: 8, kind: input, shape index: {}]
  %s9 = inlined_call_operand.vmem [shape: f32[1,32], index: 9, kind: input, shape index: {}]
  %s10 = inlined_call_operand.hbm [shape: f32[16,32], index: 10, kind: output, shape index: {}]
  %s11 = sld [smem:[#allocation0]]
  $region78: #{tpu_custom_call.1} parent=0
    _
  %s13 = ssub.s32 1, %s11
  %s14 = scalar_select 0, %s13, %s11
  $region1: #{tpu_custom_call.1} parent=0
    #allocation2 [shape = 'u8[8192]{0}', space=vmem, size = 0x2000, scoped, tag = 'input window, operand 0, single buffered']
    #allocation3 [shape = 's32[1]{0}', space=sflag, size = 0x4, scoped, tag = 'scoped memory for tpu_custom_call.1']
    #allocation4 [shape = 's32[1]{0}', space=sflag, size = 0x4, scoped, tag = 'scoped memory for tpu_custom_call.1']
    #allocation5 [shape = 'u8[8192]{0}', space=vmem, size = 0x2000, scoped, tag = 'input window, operand 1, single buffered']
    #allocation6 [shape = 's32[1]{0}', space=sflag, size = 0x4, scoped, tag = 'scoped memory for tpu_custom_call.1']
    #allocation7 [shape = 'u8[8192]{0}', space=vmem, size = 0x2000, scoped, tag = 'input window, operand 2, single buffered']
    #allocation8 [shape = 'u8[8192]{0}', space=vmem, size = 0x2000, scoped, tag = 'input window, operand 3, single buffered']
    #allocation9 [shape = 's32[1]{0}', space=sflag, size = 0x4, scoped, tag = 'scoped memory for tpu_custom_call.1']
    #allocation10 [shape = 'u8[16384]{0}', space=vmem, size = 0x4000, scoped, tag = 'input window, operand 4, single buffered']
    #allocation11 [shape = 'u8[16384]{0}', space=vmem, size = 0x4000, scoped, tag = 'input window, operand 6, single buffered']
    #allocation12 [shape = 's32[1]{0}', space=sflag, size = 0x4, scoped, tag = 'scoped memory for tpu_custom_call.1']
    #allocation13 [shape = 'u8[16384]{0}', space=vmem, size = 0x4000, scoped, tag = 'input window, operand 8, single buffered']
    #allocation14 [shape = 'u8[8192]{0}', space=vmem, size = 0x2000, scoped, tag = 'output window, operand 0, single buffered']
    %15 = vsyncpa [#allocation3], 0
    %16 = vsyncpa [#allocation6], 0
    %17 = vsyncpa [#allocation9], 0
    %18 = vsyncpa [#allocation12], 0
    %19 = vsyncpa [#allocation4], 0
    // Predicated region
    $region2: #{tpu_custom_call.1} parent=1 // pred_check
      _
    $region3: #{tpu_custom_call.1} parent=1 // pred_check_branch
      %21 = sbr.rel (0) target = $region5
    $region4: #{tpu_custom_call.1} parent=1 // pred_region
      %s23 = ssub.s32 256, 256
      %24 = vsyncadd [#allocation3], %s23
      %s25 = sshll.u32 [#allocation2], 4
      %s26 = int_to_ptr.vmem [resolvable:$true] %s25
      %31 = dma.hbm_to_vmem [thread:$0]  %s0, 256, %s26, [#allocation3], 128, 128, 8
    $region5: #{tpu_custom_call.1} parent=1 // pred_fallthru
      _
    // Predicated region
    $region6: #{tpu_custom_call.1} parent=1 // pred_check
      _
    $region7: #{tpu_custom_call.1} parent=1 // pred_check_branch
      %33 = sbr.rel (0) target = $region9
    $region8: #{tpu_custom_call.1} parent=1 // pred_region
      %s35 = ssub.s32 256, 256
      %36 = vsyncadd [#allocation6], %s35
      %s37 = sshll.u32 [#allocation5], 4
      %s38 = int_to_ptr.vmem [resolvable:$true] %s37
      %43 = dma.hbm_to_vmem [thread:$0]  %s1, 256, %s38, [#allocation6], 128, 128, 8
    $region9: #{tpu_custom_call.1} parent=1 // pred_fallthru
      _
    // Predicated region
    $region10: #{tpu_custom_call.1} parent=1 // pred_check
      _
    $region11: #{tpu_custom_call.1} parent=1 // pred_check_branch
      %45 = sbr.rel (0) target = $region13
    $region12: #{tpu_custom_call.1} parent=1 // pred_region
      %s47 = ssub.s32 256, 256
      %48 = vsyncadd [#allocation6], %s47
      %s49 = sshll.u32 [#allocation7], 4
      %s50 = int_to_ptr.vmem [resolvable:$true] %s49
      %55 = dma.hbm_to_vmem [thread:$0]  %s2, 256, %s50, [#allocation6], 128, 128, 8
    $region13: #{tpu_custom_call.1} parent=1 // pred_fallthru
      _
    // Predicated region
    $region14: #{tpu_custom_call.1} parent=1 // pred_check
      _
    $region15: #{tpu_custom_call.1} parent=1 // pred_check_branch
      %57 = sbr.rel (0) target = $region17
    $region16: #{tpu_custom_call.1} parent=1 // pred_region
      %s59 = ssub.s32 256, 256
      %60 = vsyncadd [#allocation9], %s59
      %s61 = sshll.u32 [#allocation8], 4
      %s62 = int_to_ptr.vmem [resolvable:$true] %s61
      %67 = dma.hbm_to_vmem [thread:$0]  %s3, 256, %s62, [#allocation9], 128, 128, 8
    $region17: #{tpu_custom_call.1} parent=1 // pred_fallthru
      _
    // Predicated region
    $region18: #{tpu_custom_call.1} parent=1 // pred_check
      _
    $region19: #{tpu_custom_call.1} parent=1 // pred_check_branch
      %69 = sbr.rel (0) target = $region21
    $region20: #{tpu_custom_call.1} parent=1 // pred_region
      %s71 = ssub.s32 512, 512
      %72 = vsyncadd [#allocation9], %s71
      %s73 = sshll.u32 [#allocation10], 4
      %s74 = int_to_ptr.vmem [resolvable:$true] %s73
      %79 = dma.hbm_to_vmem [thread:$0]  %s4, 512, %s74, [#allocation9], 128, 128, 8
    $region21: #{tpu_custom_call.1} parent=1 // pred_fallthru
      _
    // Predicated region
    $region22: #{tpu_custom_call.1} parent=1 // pred_check
      _
    $region23: #{tpu_custom_call.1} parent=1 // pred_check_branch
      %81 = sbr.rel (0) target = $region25
    $region24: #{tpu_custom_call.1} parent=1 // pred_region
      _
    $region25: #{tpu_custom_call.1} parent=1 // pred_fallthru
      _
    // Predicated region
    $region26: #{tpu_custom_call.1} parent=1 // pred_check
      _
    $region27: #{tpu_custom_call.1} parent=1 // pred_check_branch
      %83 = sbr.rel (0) target = $region29
    $region28: #{tpu_custom_call.1} parent=1 // pred_region
      %s85 = ssub.s32 512, 512
      %86 = vsyncadd [#allocation12], %s85
      %s87 = sshll.u32 [#allocation11], 4
      %s88 = int_to_ptr.vmem [resolvable:$true] %s87
      %93 = dma.hbm_to_vmem [thread:$0]  %s6, 512, %s88, [#allocation12], 128, 128, 8
    $region29: #{tpu_custom_call.1} parent=1 // pred_fallthru
      _
    // Predicated region
    $region30: #{tpu_custom_call.1} parent=1 // pred_check
      _
    $region31: #{tpu_custom_call.1} parent=1 // pred_check_branch
      %95 = sbr.rel (0) target = $region33
    $region32: #{tpu_custom_call.1} parent=1 // pred_region
      _
    $region33: #{tpu_custom_call.1} parent=1 // pred_fallthru
      _
    // Predicated region
    $region34: #{tpu_custom_call.1} parent=1 // pred_check
      _
    $region35: #{tpu_custom_call.1} parent=1 // pred_check_branch
      %97 = sbr.rel (0) target = $region37
    $region36: #{tpu_custom_call.1} parent=1 // pred_region
      %s99 = ssub.s32 512, 512
      %100 = vsyncadd [#allocation12], %s99
      %s101 = sshll.u32 [#allocation13], 4
      %s102 = int_to_ptr.vmem [resolvable:$true] %s101
      %107 = dma.hbm_to_vmem [thread:$0]  %s8, 512, %s102, [#allocation12], 128, 128, 8
    $region37: #{tpu_custom_call.1} parent=1 // pred_fallthru
      _
    // Predicated region
    $region38: #{tpu_custom_call.1} parent=1 // pred_check
      _
    $region39: #{tpu_custom_call.1} parent=1 // pred_check_branch
      %109 = sbr.rel (0) target = $region41
    $region40: #{tpu_custom_call.1} parent=1 // pred_region
      _
    $region41: #{tpu_custom_call.1} parent=1 // pred_fallthru
      _
    // Predicated region
    $region42: #{tpu_custom_call.1} parent=1 // pred_check
      _
    $region43: #{tpu_custom_call.1} parent=1 // pred_check_branch
      %111 = sbr.rel (0) target = $region45
    $region44: #{tpu_custom_call.1} parent=1 // pred_region
      %112 = dma.done [#allocation3], 256
    $region45: #{tpu_custom_call.1} parent=1 // pred_fallthru
      _
    // Predicated region
    $region46: #{tpu_custom_call.1} parent=1 // pred_check
      _
    $region47: #{tpu_custom_call.1} parent=1 // pred_check_branch
      %114 = sbr.rel (0) target = $region49
    $region48: #{tpu_custom_call.1} parent=1 // pred_region
      %115 = dma.done [#allocation6], 256
    $region49: #{tpu_custom_call.1} parent=1 // pred_fallthru
      _
    // Predicated region
    $region50: #{tpu_custom_call.1} parent=1 // pred_check
      _
    $region51: #{tpu_custom_call.1} parent=1 // pred_check_branch
      %117 = sbr.rel (0) target = $region53
    $region52: #{tpu_custom_call.1} parent=1 // pred_region
      %118 = dma.done [#allocation6], 256
    $region53: #{tpu_custom_call.1} parent=1 // pred_fallthru
      _
    // Predicated region
    $region54: #{tpu_custom_call.1} parent=1 // pred_check
      _
    $region55: #{tpu_custom_call.1} parent=1 // pred_check_branch
      %120 = sbr.rel (0) target = $region57
    $region56: #{tpu_custom_call.1} parent=1 // pred_region
      %121 = dma.done [#allocation9], 256
    $region57: #{tpu_custom_call.1} parent=1 // pred_fallthru
      _
    // Predicated region
    $region58: #{tpu_custom_call.1} parent=1 // pred_check
      _
    $region59: #{tpu_custom_call.1} parent=1 // pred_check_branch
      %123 = sbr.rel (0) target = $region61
    $region60: #{tpu_custom_call.1} parent=1 // pred_region
      %124 = dma.done [#allocation9], 512
    $region61: #{tpu_custom_call.1} parent=1 // pred_fallthru
      _
    // Predicated region
    $region62: #{tpu_custom_call.1} parent=1 // pred_check
      _
    $region63: #{tpu_custom_call.1} parent=1 // pred_check_branch
      %126 = sbr.rel (0) target = $region65
    $region64: #{tpu_custom_call.1} parent=1 // pred_region
      %127 = dma.done [#allocation12], 512
    $region65: #{tpu_custom_call.1} parent=1 // pred_fallthru
      _
    // Predicated region
    $region66: #{tpu_custom_call.1} parent=1 // pred_check
      _
    $region67: #{tpu_custom_call.1} parent=1 // pred_check_branch
      %129 = sbr.rel (0) target = $region69
    $region68: #{tpu_custom_call.1} parent=1 // pred_region
      %130 = dma.done [#allocation12], 512
    $region69: #{tpu_custom_call.1} parent=1 // pred_fallthru
      _
    %v131 = vld [vmem:[#allocation2] sm:$0xff]
    %v132 = vld [vmem:[#allocation2 + $0x8] sm:$0xff]
    %v133 = vld [vmem:[#allocation5] sm:$0xff]
    %v134 = vld [vmem:[#allocation5 + $0x8] sm:$0xff]
    %v135 = vld [vmem:[#allocation7] sm:$0xff]
    %v136 = vld [vmem:[#allocation7 + $0x8] sm:$0xff]
    %vm137 = vcmp.gt.f32.partialorder %v135, 0.0
    %vm138 = vcmp.gt.f32.partialorder %v136, 0.0
    %v139 = vld [vmem:[#allocation8] sm:$0xff]
    %v140 = vld [vmem:[#allocation8 + $0x8] sm:$0xff]
    %v141 = vld [vmem:[#allocation10] sm:$0xff]
    %v142 = vld [vmem:[#allocation10 + $0x8] sm:$0xff]
    %v143 = vld [vmem:[#allocation10 + $0x10] sm:$0xff]
    %v144 = vld [vmem:[#allocation10 + $0x18] sm:$0xff]
    %v145 = vld [vmem:[%s5] sm:$0x1]
    %v147 = vlaneseq
    %v148 = vshrl.u32 %v147, 7
    %v149 = vsub.s32 0, %v148
    %v150 = vrot.slane %v145, %v149
    %vm152 = vcmask 261120
    %v154 = vsel %vm152, %v131, 0
    %v157 = vsel %vm152, %v132, 0
    %159 = vmatprep.subr.mxu0 0.0
    %160 = vmatpush1.msra.mxu0 %v141
    %161 = vmatprep.subr.mxu0 0.0
    %162 = vmatpush1.msra.mxu0 %v142
    %163 = vmatprep.subr.mxu0 0.0
    %164 = vmatpush1.msra.mxu0 %v143
    %165 = vmatprep.subr.mxu0 0.0
    %166 = vmatpush1.msra.mxu0 %v144
    %167 = vmatprep.subr.mxu0 0.0
    %168 = vmatpush1.msra.mxu0 0.0
    %169 = vmatprep.subr.mxu0 0.0
    %170 = vmatpush1.msra.mxu0 0.0
    %171 = vmatprep.subr.mxu0 0.0
    %172 = vmatpush1.msra.mxu0 0.0
    %173 = vmatprep.subr.mxu0 0.0
    %174 = vmatpush1.msra.mxu0 0.0
    %175 = vmatprep.subr.mxu0 0.0
    %176 = vmatpush1.msra.mxu0 0.0
    %177 = vmatprep.subr.mxu0 0.0
    %178 = vmatpush1.msra.mxu0 0.0
    %179 = vmatprep.subr.mxu0 0.0
    %180 = vmatpush1.msra.mxu0 0.0
    %181 = vmatprep.subr.mxu0 0.0
    %182 = vmatpush1.msra.mxu0 0.0
    %183 = vmatprep.subr.mxu0 0.0
    %184 = vmatpush1.msra.mxu0 0.0
    %185 = vmatprep.subr.mxu0 0.0
    %186 = vmatpush1.msra.mxu0 0.0
    %187 = vmatprep.subr.mxu0 0.0
    %188 = vmatpush1.msra.mxu0 0.0
    %189 = vmatprep.subr.mxu0 0.0
    %190 = vmatpush1.msra.mxu0 0.0
    %191 = vmatprep.subr.mxu0 0.0
    %192 = vmatpush1.msra.mxu0 0.0
    %193 = vmatprep.subr.mxu0 0.0
    %194 = vmatpush1.msra.mxu0 0.0
    %195 = vmatprep.subr.mxu0 0.0
    %196 = vmatpush1.msra.mxu0 0.0
    %197 = vmatprep.subr.mxu0 0.0
    %198 = vmatpush1.msra.mxu0 0.0
    %199 = vmatprep.subr.mxu0 0.0
    %200 = vmatpush1.msra.mxu0 0.0
    %201 = vmatprep.subr.mxu0 0.0
    %202 = vmatpush1.msra.mxu0 0.0
    %203 = vmatprep.subr.mxu0 0.0
    %204 = vmatpush1.msra.mxu0 0.0
    %205 = vmatprep.subr.mxu0 0.0
    %206 = vmatpush1.msra.mxu0 0.0
    %207 = vmatprep.subr.mxu0 0.0
    %208 = vmatpush1.msra.mxu0 0.0
    %209 = vmatprep.subr.mxu0 0.0
    %210 = vmatpush1.msra.mxu0 0.0
    %211 = vmatprep.subr.mxu0 0.0
    %212 = vmatpush1.msra.mxu0 0.0
    %213 = vmatprep.subr.mxu0 0.0
    %214 = vmatpush1.msra.mxu0 0.0
    %215 = vmatprep.subr.mxu0 0.0
    %216 = vmatpush1.msra.mxu0 0.0
    %217 = vmatprep.subr.mxu0 0.0
    %218 = vmatpush1.msra.mxu0 0.0
    %219 = vmatprep.subr.mxu0 0.0
    %220 = vmatpush1.msra.mxu0 0.0
    %221 = vmatprep.subr.mxu0 0.0
    %222 = vmatpush1.msra.mxu0 0.0
    %223 = vmatprep.mubr.f32.mxu0 0.0
    %224 = vmatmul.mubr.f32.gmra.mrb[0].mxu0 %v154
    %v225 = vpop.f32.mrb[0].mxu0
    %v226 = vadd.f32 %v150, %v225
    %v227 = vpop.f32.mrb[0].mxu0
    %228 = vmatprep.mubr.f32.mxu0 0.0
    %229 = vmatmul.mubr.f32.gmra.mrb[0].mxu0 %v157
    %v230 = vpop.f32.mrb[0].mxu0
    %v231 = vadd.f32 %v150, %v230
    %v232 = vpop.f32.mrb[0].mxu0
    %233 = vdwg.mxu0
    %v234 = vld [vmem:[#allocation11] sm:$0xff]
    %v235 = vld [vmem:[#allocation11 + $0x8] sm:$0xff]
    %v236 = vld [vmem:[#allocation11 + $0x10] sm:$0xff]
    %v237 = vld [vmem:[#allocation11 + $0x18] sm:$0xff]
    %v238 = vld [vmem:[%s7] sm:$0x1]
    %v240 = vlaneseq
    %v241 = vshrl.u32 %v240, 7
    %v242 = vsub.s32 0, %v241
    %v243 = vrot.slane %v238, %v242
    %v246 = vsel %vm152, %v133, 0
    %v249 = vsel %vm152, %v134, 0
    %251 = vmatprep.subr.mxu0 0.0
    %252 = vmatpush1.msra.mxu0 %v234
    %253 = vmatprep.subr.mxu0 0.0
    %254 = vmatpush1.msra.mxu0 %v235
    %255 = vmatprep.subr.mxu0 0.0
    %256 = vmatpush1.msra.mxu0 %v236
    %257 = vmatprep.subr.mxu0 0.0
    %258 = vmatpush1.msra.mxu0 %v237
    %259 = vmatprep.subr.mxu0 0.0
    %260 = vmatpush1.msra.mxu0 0.0
    %261 = vmatprep.subr.mxu0 0.0
    %262 = vmatpush1.msra.mxu0 0.0
    %263 = vmatprep.subr.mxu0 0.0
    %264 = vmatpush1.msra.mxu0 0.0
    %265 = vmatprep.subr.mxu0 0.0
    %266 = vmatpush1.msra.mxu0 0.0
    %267 = vmatprep.subr.mxu0 0.0
    %268 = vmatpush1.msra.mxu0 0.0
    %269 = vmatprep.subr.mxu0 0.0
    %270 = vmatpush1.msra.mxu0 0.0
    %271 = vmatprep.subr.mxu0 0.0
    %272 = vmatpush1.msra.mxu0 0.0
    %273 = vmatprep.subr.mxu0 0.0
    %274 = vmatpush1.msra.mxu0 0.0
    %275 = vmatprep.subr.mxu0 0.0
    %276 = vmatpush1.msra.mxu0 0.0
    %277 = vmatprep.subr.mxu0 0.0
    %278 = vmatpush1.msra.mxu0 0.0
    %279 = vmatprep.subr.mxu0 0.0
    %280 = vmatpush1.msra.mxu0 0.0
    %281 = vmatprep.subr.mxu0 0.0
    %282 = vmatpush1.msra.mxu0 0.0
    %283 = vmatprep.subr.mxu0 0.0
    %284 = vmatpush1.msra.mxu0 0.0
    %285 = vmatprep.subr.mxu0 0.0
    %286 = vmatpush1.msra.mxu0 0.0
    %287 = vmatprep.subr.mxu0 0.0
    %288 = vmatpush1.msra.mxu0 0.0
    %289 = vmatprep.subr.mxu0 0.0
    %290 = vmatpush1.msra.mxu0 0.0
    %291 = vmatprep.subr.mxu0 0.0
    %292 = vmatpush1.msra.mxu0 0.0
    %293 = vmatprep.subr.mxu0 0.0
    %294 = vmatpush1.msra.mxu0 0.0
    %295 = vmatprep.subr.mxu0 0.0
    %296 = vmatpush1.msra.mxu0 0.0
    %297 = vmatprep.subr.mxu0 0.0
    %298 = vmatpush1.msra.mxu0 0.0
    %299 = vmatprep.subr.mxu0 0.0
    %300 = vmatpush1.msra.mxu0 0.0
    %301 = vmatprep.subr.mxu0 0.0
    %302 = vmatpush1.msra.mxu0 0.0
    %303 = vmatprep.subr.mxu0 0.0
    %304 = vmatpush1.msra.mxu0 0.0
    %305 = vmatprep.subr.mxu0 0.0
    %306 = vmatpush1.msra.mxu0 0.0
    %307 = vmatprep.subr.mxu0 0.0
    %308 = vmatpush1.msra.mxu0 0.0
    %309 = vmatprep.subr.mxu0 0.0
    %310 = vmatpush1.msra.mxu0 0.0
    %311 = vmatprep.subr.mxu0 0.0
    %312 = vmatpush1.msra.mxu0 0.0
    %313 = vmatprep.subr.mxu0 0.0
    %314 = vmatpush1.msra.mxu0 0.0
    %315 = vmatprep.mubr.f32.mxu0 0.0
    %316 = vmatmul.mubr.f32.gmra.mrb[0].mxu0 %v246
    %v317 = vpop.f32.mrb[0].mxu0
    %v318 = vadd.f32 %v243, %v317
    %v319 = vpop.f32.mrb[0].mxu0
    %320 = vmatprep.mubr.f32.mxu0 0.0
    %321 = vmatmul.mubr.f32.gmra.mrb[0].mxu0 %v249
    %v322 = vpop.f32.mrb[0].mxu0
    %v323 = vadd.f32 %v243, %v322
    %v324 = vpop.f32.mrb[0].mxu0
    %325 = vdwg.mxu0
    %v326 = vld [vmem:[#allocation13] sm:$0xff]
    %v327 = vld [vmem:[#allocation13 + $0x8] sm:$0xff]
    %v328 = vld [vmem:[#allocation13 + $0x10] sm:$0xff]
    %v329 = vld [vmem:[#allocation13 + $0x18] sm:$0xff]
    %vm330 = vcmask 64512
    %v332 = vsel %vm330, %v318, 0
    %v335 = vsel %vm330, %v323, 0
    %v338 = vsel %vm330, %v226, 0
    %v341 = vsel %vm330, %v231, 0
    %343 = vmatprep.subr.mxu0 0.0
    %344 = vmatpush1.xpose.msra.mxu0 %v338
    %345 = vmatprep.subr.mxu0 0.0
    %346 = vmatpush1.xpose.msra.mxu0 %v341
    %347 = vmatprep.subr.mxu0 0.0
    %348 = vmatpush1.xpose.msra.mxu0 0.0
    %349 = vmatprep.subr.mxu0 0.0
    %350 = vmatpush1.xpose.msra.mxu0 0.0
    %351 = vmatprep.subr.mxu0 0.0
    %352 = vmatpush1.xpose.msra.mxu0 0.0
    %353 = vmatprep.subr.mxu0 0.0
    %354 = vmatpush1.xpose.msra.mxu0 0.0
    %355 = vmatprep.subr.mxu0 0.0
    %356 = vmatpush1.xpose.msra.mxu0 0.0
    %357 = vmatprep.subr.mxu0 0.0
    %358 = vmatpush1.xpose.msra.mxu0 0.0
    %359 = vmatprep.subr.mxu0 0.0
    %360 = vmatpush1.xpose.msra.mxu0 0.0
    %361 = vmatprep.subr.mxu0 0.0
    %362 = vmatpush1.xpose.msra.mxu0 0.0
    %363 = vmatprep.subr.mxu0 0.0
    %364 = vmatpush1.xpose.msra.mxu0 0.0
    %365 = vmatprep.subr.mxu0 0.0
    %366 = vmatpush1.xpose.msra.mxu0 0.0
    %367 = vmatprep.subr.mxu0 0.0
    %368 = vmatpush1.xpose.msra.mxu0 0.0
    %369 = vmatprep.subr.mxu0 0.0
    %370 = vmatpush1.xpose.msra.mxu0 0.0
    %371 = vmatprep.subr.mxu0 0.0
    %372 = vmatpush1.xpose.msra.mxu0 0.0
    %373 = vmatprep.subr.mxu0 0.0
    %374 = vmatpush1.xpose.msra.mxu0 0.0
    %375 = vmatprep.subr.mxu0 0.0
    %376 = vmatpush1.xpose.msra.mxu0 0.0
    %377 = vmatprep.subr.mxu0 0.0
    %378 = vmatpush1.xpose.msra.mxu0 0.0
    %379 = vmatprep.subr.mxu0 0.0
    %380 = vmatpush1.xpose.msra.mxu0 0.0
    %381 = vmatprep.subr.mxu0 0.0
    %382 = vmatpush1.xpose.msra.mxu0 0.0
    %383 = vmatprep.subr.mxu0 0.0
    %384 = vmatpush1.xpose.msra.mxu0 0.0
    %385 = vmatprep.subr.mxu0 0.0
    %386 = vmatpush1.xpose.msra.mxu0 0.0
    %387 = vmatprep.subr.mxu0 0.0
    %388 = vmatpush1.xpose.msra.mxu0 0.0
    %389 = vmatprep.subr.mxu0 0.0
    %390 = vmatpush1.xpose.msra.mxu0 0.0
    %391 = vmatprep.subr.mxu0 0.0
    %392 = vmatpush1.xpose.msra.mxu0 0.0
    %393 = vmatprep.subr.mxu0 0.0
    %394 = vmatpush1.xpose.msra.mxu0 0.0
    %395 = vmatprep.subr.mxu0 0.0
    %396 = vmatpush1.xpose.msra.mxu0 0.0
    %397 = vmatprep.subr.mxu0 0.0
    %398 = vmatpush1.xpose.msra.mxu0 0.0
    %399 = vmatprep.subr.mxu0 0.0
    %400 = vmatpush1.xpose.msra.mxu0 0.0
    %401 = vmatprep.subr.mxu0 0.0
    %402 = vmatpush1.xpose.msra.mxu0 0.0
    %403 = vmatprep.subr.mxu0 0.0
    %404 = vmatpush1.xpose.msra.mxu0 0.0
    %405 = vmatprep.subr.mxu0 0.0
    %406 = vmatpush1.xpose.msra.mxu0 0.0
    %407 = vmatprep.mubr.f32.mxu0 0.0
    %408 = vmatmul.mubr.f32.gmra.mrb[0].mxu0 %v332
    %v409 = vpop.f32.mrb[0].mxu0
    %v410 = vadd.f32 0.0, %v409
    %v411 = vpop.f32.mrb[0].mxu0
    %412 = vmatprep.mubr.f32.mxu0 0.0
    %413 = vmatmul.mubr.f32.gmra.mrb[0].mxu0 %v335
    %v414 = vpop.f32.mrb[0].mxu0
    %v415 = vadd.f32 0.0, %v414
    %v416 = vpop.f32.mrb[0].mxu0
    %417 = vdwg.mxu0
    %v418 = vsel %vm137, -1e+09, %v410
    %v419 = vsel %vm138, -1e+09, %v415
    %v420 = vadd.f32 %v418, %v139
    %v421 = vadd.f32 %v419, %v140
    %vm422 = vcmask 130048
    %v423 = vsel %vm422, %v420, -inf
    %424 = vmax.xlane.f32.xlu0 %v423
    %v425 = vpop.xlane.xlu0 %424
    %v426 = vsel %vm422, %v421, -inf
    %427 = vmax.xlane.f32.xlu0 %v426
    %v428 = vpop.xlane.xlu0 %427
    %v429 = vsub.f32 %v420, %v425
    %v430 = vsub.f32 %v421, %v428
    %v431 = vmul.f32 %v429, 1.442695
    %v432 = vpow.pop %v431
    %v433 = vmul.f32 %v430, 1.442695
    %v434 = vpow.pop %v433
    %v435 = vsel %vm422, %v432, 0.0
    %436 = vadd.xlane.f32.xlu0 %v435
    %v437 = vpop.xlane.xlu0 %436
    %v438 = vsel %vm422, %v434, 0.0
    %439 = vadd.xlane.f32.xlu0 %v438
    %v440 = vpop.xlane.xlu0 %439
    %v441 = vrcp.pop %v437
    %v442 = vrcp.pop %v440
    %v443 = vmul.f32 %v432, %v441
    %v444 = vmul.f32 %v434, %v442
    %v446 = vsel %vm422, %v443, 0
    %v449 = vsel %vm422, %v444, 0
    %451 = vmatprep.subr.mxu0 0.0
    %452 = vmatpush1.msra.mxu0 %v226
    %453 = vmatprep.subr.mxu0 0.0
    %454 = vmatpush1.msra.mxu0 %v231
    %455 = vmatprep.subr.mxu0 0.0
    %456 = vmatpush1.msra.mxu0 0.0
    %457 = vmatprep.subr.mxu0 0.0
    %458 = vmatpush1.msra.mxu0 0.0
    %459 = vmatprep.subr.mxu0 0.0
    %460 = vmatpush1.msra.mxu0 0.0
    %461 = vmatprep.subr.mxu0 0.0
    %462 = vmatpush1.msra.mxu0 0.0
    %463 = vmatprep.subr.mxu0 0.0
    %464 = vmatpush1.msra.mxu0 0.0
    %465 = vmatprep.subr.mxu0 0.0
    %466 = vmatpush1.msra.mxu0 0.0
    %467 = vmatprep.subr.mxu0 0.0
    %468 = vmatpush1.msra.mxu0 0.0
    %469 = vmatprep.subr.mxu0 0.0
    %470 = vmatpush1.msra.mxu0 0.0
    %471 = vmatprep.subr.mxu0 0.0
    %472 = vmatpush1.msra.mxu0 0.0
    %473 = vmatprep.subr.mxu0 0.0
    %474 = vmatpush1.msra.mxu0 0.0
    %475 = vmatprep.subr.mxu0 0.0
    %476 = vmatpush1.msra.mxu0 0.0
    %477 = vmatprep.subr.mxu0 0.0
    %478 = vmatpush1.msra.mxu0 0.0
    %479 = vmatprep.subr.mxu0 0.0
    %480 = vmatpush1.msra.mxu0 0.0
    %481 = vmatprep.subr.mxu0 0.0
    %482 = vmatpush1.msra.mxu0 0.0
    %483 = vmatprep.subr.mxu0 0.0
    %484 = vmatpush1.msra.mxu0 0.0
    %485 = vmatprep.subr.mxu0 0.0
    %486 = vmatpush1.msra.mxu0 0.0
    %487 = vmatprep.subr.mxu0 0.0
    %488 = vmatpush1.msra.mxu0 0.0
    %489 = vmatprep.subr.mxu0 0.0
    %490 = vmatpush1.msra.mxu0 0.0
    %491 = vmatprep.subr.mxu0 0.0
    %492 = vmatpush1.msra.mxu0 0.0
    %493 = vmatprep.subr.mxu0 0.0
    %494 = vmatpush1.msra.mxu0 0.0
    %495 = vmatprep.subr.mxu0 0.0
    %496 = vmatpush1.msra.mxu0 0.0
    %497 = vmatprep.subr.mxu0 0.0
    %498 = vmatpush1.msra.mxu0 0.0
    %499 = vmatprep.subr.mxu0 0.0
    %500 = vmatpush1.msra.mxu0 0.0
    %501 = vmatprep.subr.mxu0 0.0
    %502 = vmatpush1.msra.mxu0 0.0
    %503 = vmatprep.subr.mxu0 0.0
    %504 = vmatpush1.msra.mxu0 0.0
    %505 = vmatprep.subr.mxu0 0.0
    %506 = vmatpush1.msra.mxu0 0.0
    %507 = vmatprep.subr.mxu0 0.0
    %508 = vmatpush1.msra.mxu0 0.0
    %509 = vmatprep.subr.mxu0 0.0
    %510 = vmatpush1.msra.mxu0 0.0
    %511 = vmatprep.subr.mxu0 0.0
    %512 = vmatpush1.msra.mxu0 0.0
    %513 = vmatprep.subr.mxu0 0.0
    %514 = vmatpush1.msra.mxu0 0.0
    %515 = vmatprep.mubr.f32.mxu0 0.0
    %516 = vmatmul.mubr.f32.gmra.mrb[0].mxu0 %v446
    %v517 = vpop.f32.mrb[0].mxu0
    %v518 = vadd.f32 0.0, %v517
    %v519 = vpop.f32.mrb[0].mxu0
    %520 = vmatprep.mubr.f32.mxu0 0.0
    %521 = vmatmul.mubr.f32.gmra.mrb[0].mxu0 %v449
    %v522 = vpop.f32.mrb[0].mxu0
    %v523 = vadd.f32 0.0, %v522
    %v524 = vpop.f32.mrb[0].mxu0
    %525 = vdwg.mxu0
    %526 = vrot.lane.b32.xlu0 %v318, 120
    %v527 = vpop.permute.xlu0 %526
    %528 = vrot.lane.b32.xlu0 %v323, 120
    %v529 = vpop.permute.xlu0 %528
    %530 = vrot.lane.b32.xlu0 %v226, 120
    %v531 = vpop.permute.xlu0 %530
    %532 = vrot.lane.b32.xlu0 %v231, 120
    %v533 = vpop.permute.xlu0 %532
    %v534 = vsel %vm330, %v527, 0
    %v536 = vsel %vm330, %v529, 0
    %v538 = vsel %vm330, %v531, 0
    %v540 = vsel %vm330, %v533, 0
    %542 = vmatprep.subr.mxu0 0.0
    %543 = vmatpush1.xpose.msra.mxu0 %v538
    %544 = vmatprep.subr.mxu0 0.0
    %545 = vmatpush1.xpose.msra.mxu0 %v540
    %546 = vmatprep.subr.mxu0 0.0
    %547 = vmatpush1.xpose.msra.mxu0 0.0
    %548 = vmatprep.subr.mxu0 0.0
    %549 = vmatpush1.xpose.msra.mxu0 0.0
    %550 = vmatprep.subr.mxu0 0.0
    %551 = vmatpush1.xpose.msra.mxu0 0.0
    %552 = vmatprep.subr.mxu0 0.0
    %553 = vmatpush1.xpose.msra.mxu0 0.0
    %554 = vmatprep.subr.mxu0 0.0
    %555 = vmatpush1.xpose.msra.mxu0 0.0
    %556 = vmatprep.subr.mxu0 0.0
    %557 = vmatpush1.xpose.msra.mxu0 0.0
    %558 = vmatprep.subr.mxu0 0.0
    %559 = vmatpush1.xpose.msra.mxu0 0.0
    %560 = vmatprep.subr.mxu0 0.0
    %561 = vmatpush1.xpose.msra.mxu0 0.0
    %562 = vmatprep.subr.mxu0 0.0
    %563 = vmatpush1.xpose.msra.mxu0 0.0
    %564 = vmatprep.subr.mxu0 0.0
    %565 = vmatpush1.xpose.msra.mxu0 0.0
    %566 = vmatprep.subr.mxu0 0.0
    %567 = vmatpush1.xpose.msra.mxu0 0.0
    %568 = vmatprep.subr.mxu0 0.0
    %569 = vmatpush1.xpose.msra.mxu0 0.0
    %570 = vmatprep.subr.mxu0 0.0
    %571 = vmatpush1.xpose.msra.mxu0 0.0
    %572 = vmatprep.subr.mxu0 0.0
    %573 = vmatpush1.xpose.msra.mxu0 0.0
    %574 = vmatprep.subr.mxu0 0.0
    %575 = vmatpush1.xpose.msra.mxu0 0.0
    %576 = vmatprep.subr.mxu0 0.0
    %577 = vmatpush1.xpose.msra.mxu0 0.0
    %578 = vmatprep.subr.mxu0 0.0
    %579 = vmatpush1.xpose.msra.mxu0 0.0
    %580 = vmatprep.subr.mxu0 0.0
    %581 = vmatpush1.xpose.msra.mxu0 0.0
    %582 = vmatprep.subr.mxu0 0.0
    %583 = vmatpush1.xpose.msra.mxu0 0.0
    %584 = vmatprep.subr.mxu0 0.0
    %585 = vmatpush1.xpose.msra.mxu0 0.0
    %586 = vmatprep.subr.mxu0 0.0
    %587 = vmatpush1.xpose.msra.mxu0 0.0
    %588 = vmatprep.subr.mxu0 0.0
    %589 = vmatpush1.xpose.msra.mxu0 0.0
    %590 = vmatprep.subr.mxu0 0.0
    %591 = vmatpush1.xpose.msra.mxu0 0.0
    %592 = vmatprep.subr.mxu0 0.0
    %593 = vmatpush1.xpose.msra.mxu0 0.0
    %594 = vmatprep.subr.mxu0 0.0
    %595 = vmatpush1.xpose.msra.mxu0 0.0
    %596 = vmatprep.subr.mxu0 0.0
    %597 = vmatpush1.xpose.msra.mxu0 0.0
    %598 = vmatprep.subr.mxu0 0.0
    %599 = vmatpush1.xpose.msra.mxu0 0.0
    %600 = vmatprep.subr.mxu0 0.0
    %601 = vmatpush1.xpose.msra.mxu0 0.0
    %602 = vmatprep.subr.mxu0 0.0
    %603 = vmatpush1.xpose.msra.mxu0 0.0
    %604 = vmatprep.subr.mxu0 0.0
    %605 = vmatpush1.xpose.msra.mxu0 0.0
    %606 = vmatprep.mubr.f32.mxu0 0.0
    %607 = vmatmul.mubr.f32.gmra.mrb[0].mxu0 %v534
    %v608 = vpop.f32.mrb[0].mxu0
    %v609 = vadd.f32 0.0, %v608
    %v610 = vpop.f32.mrb[0].mxu0
    %611 = vmatprep.mubr.f32.mxu0 0.0
    %612 = vmatmul.mubr.f32.gmra.mrb[0].mxu0 %v536
    %v613 = vpop.f32.mrb[0].mxu0
    %v614 = vadd.f32 0.0, %v613
    %v615 = vpop.f32.mrb[0].mxu0
    %616 = vdwg.mxu0
    %v617 = vsel %vm137, -1e+09, %v609
    %v618 = vsel %vm138, -1e+09, %v614
    %v619 = vadd.f32 %v617, %v139
    %v620 = vadd.f32 %v618, %v140
    %v621 = vsel %vm422, %v619, -inf
    %622 = vmax.xlane.f32.xlu0 %v621
    %v623 = vpop.xlane.xlu0 %622
    %v624 = vsel %vm422, %v620, -inf
    %625 = vmax.xlane.f32.xlu0 %v624
    %v626 = vpop.xlane.xlu0 %625
    %v627 = vsub.f32 %v619, %v623
    %v628 = vsub.f32 %v620, %v626
    %v629 = vmul.f32 %v627, 1.442695
    %v630 = vpow.pop %v629
    %v631 = vmul.f32 %v628, 1.442695
    %v632 = vpow.pop %v631
    %v633 = vsel %vm422, %v630, 0.0
    %634 = vadd.xlane.f32.xlu0 %v633
    %v635 = vpop.xlane.xlu0 %634
    %v636 = vsel %vm422, %v632, 0.0
    %637 = vadd.xlane.f32.xlu0 %v636
    %v638 = vpop.xlane.xlu0 %637
    %v639 = vrcp.pop %v635
    %v640 = vrcp.pop %v638
    %v641 = vmul.f32 %v630, %v639
    %v642 = vmul.f32 %v632, %v640
    %v646 = vsel %vm422, %v641, 0
    %v649 = vsel %vm422, %v642, 0
    %651 = vmatprep.subr.mxu0 0.0
    %652 = vmatpush1.msra.mxu0 %v531
    %653 = vmatprep.subr.mxu0 0.0
    %654 = vmatpush1.msra.mxu0 %v533
    %655 = vmatprep.subr.mxu0 0.0
    %656 = vmatpush1.msra.mxu0 0.0
    %657 = vmatprep.subr.mxu0 0.0
    %658 = vmatpush1.msra.mxu0 0.0
    %659 = vmatprep.subr.mxu0 0.0
    %660 = vmatpush1.msra.mxu0 0.0
    %661 = vmatprep.subr.mxu0 0.0
    %662 = vmatpush1.msra.mxu0 0.0
    %663 = vmatprep.subr.mxu0 0.0
    %664 = vmatpush1.msra.mxu0 0.0
    %665 = vmatprep.subr.mxu0 0.0
    %666 = vmatpush1.msra.mxu0 0.0
    %667 = vmatprep.subr.mxu0 0.0
    %668 = vmatpush1.msra.mxu0 0.0
    %669 = vmatprep.subr.mxu0 0.0
    %670 = vmatpush1.msra.mxu0 0.0
    %671 = vmatprep.subr.mxu0 0.0
    %672 = vmatpush1.msra.mxu0 0.0
    %673 = vmatprep.subr.mxu0 0.0
    %674 = vmatpush1.msra.mxu0 0.0
    %675 = vmatprep.subr.mxu0 0.0
    %676 = vmatpush1.msra.mxu0 0.0
    %677 = vmatprep.subr.mxu0 0.0
    %678 = vmatpush1.msra.mxu0 0.0
    %679 = vmatprep.subr.mxu0 0.0
    %680 = vmatpush1.msra.mxu0 0.0
    %681 = vmatprep.subr.mxu0 0.0
    %682 = vmatpush1.msra.mxu0 0.0
    %683 = vmatprep.subr.mxu0 0.0
    %684 = vmatpush1.msra.mxu0 0.0
    %685 = vmatprep.subr.mxu0 0.0
    %686 = vmatpush1.msra.mxu0 0.0
    %687 = vmatprep.subr.mxu0 0.0
    %688 = vmatpush1.msra.mxu0 0.0
    %689 = vmatprep.subr.mxu0 0.0
    %690 = vmatpush1.msra.mxu0 0.0
    %691 = vmatprep.subr.mxu0 0.0
    %692 = vmatpush1.msra.mxu0 0.0
    %693 = vmatprep.subr.mxu0 0.0
    %694 = vmatpush1.msra.mxu0 0.0
    %695 = vmatprep.subr.mxu0 0.0
    %696 = vmatpush1.msra.mxu0 0.0
    %697 = vmatprep.subr.mxu0 0.0
    %698 = vmatpush1.msra.mxu0 0.0
    %699 = vmatprep.subr.mxu0 0.0
    %700 = vmatpush1.msra.mxu0 0.0
    %701 = vmatprep.subr.mxu0 0.0
    %702 = vmatpush1.msra.mxu0 0.0
    %703 = vmatprep.subr.mxu0 0.0
    %704 = vmatpush1.msra.mxu0 0.0
    %705 = vmatprep.subr.mxu0 0.0
    %706 = vmatpush1.msra.mxu0 0.0
    %707 = vmatprep.subr.mxu0 0.0
    %708 = vmatpush1.msra.mxu0 0.0
    %709 = vmatprep.subr.mxu0 0.0
    %710 = vmatpush1.msra.mxu0 0.0
    %711 = vmatprep.subr.mxu0 0.0
    %712 = vmatpush1.msra.mxu0 0.0
    %713 = vmatprep.subr.mxu0 0.0
    %714 = vmatpush1.msra.mxu0 0.0
    %715 = vmatprep.mubr.f32.mxu0 0.0
    %716 = vmatmul.mubr.f32.gmra.mrb[0].mxu0 %v646
    %v717 = vpop.f32.mrb[0].mxu0
    %v718 = vadd.f32 0.0, %v717
    %v719 = vpop.f32.mrb[0].mxu0
    %720 = vmatprep.mubr.f32.mxu0 0.0
    %721 = vmatmul.mubr.f32.gmra.mrb[0].mxu0 %v649
    %v722 = vpop.f32.mrb[0].mxu0
    %v723 = vadd.f32 0.0, %v722
    %v724 = vpop.f32.mrb[0].mxu0
    %725 = vdwg.mxu0
    %v727 = vsel %vm330, %v718, 0
    %v730 = vsel %vm330, %v723, 0
    %732 = vmatprep.subr.mxu0 0.0
    %733 = vmatpush1.msra.mxu0 %v327
    %734 = vmatprep.subr.mxu0 0.0
    %735 = vmatpush1.msra.mxu0 0.0
    %736 = vmatprep.subr.mxu0 0.0
    %737 = vmatpush1.msra.mxu0 0.0
    %738 = vmatprep.subr.mxu0 0.0
    %739 = vmatpush1.msra.mxu0 0.0
    %740 = vmatprep.subr.mxu0 0.0
    %741 = vmatpush1.msra.mxu0 0.0
    %742 = vmatprep.subr.mxu0 0.0
    %743 = vmatpush1.msra.mxu0 0.0
    %744 = vmatprep.subr.mxu0 0.0
    %745 = vmatpush1.msra.mxu0 0.0
    %746 = vmatprep.subr.mxu0 0.0
    %747 = vmatpush1.msra.mxu0 0.0
    %748 = vmatprep.subr.mxu0 0.0
    %749 = vmatpush1.msra.mxu0 0.0
    %750 = vmatprep.subr.mxu0 0.0
    %751 = vmatpush1.msra.mxu0 0.0
    %752 = vmatprep.subr.mxu0 0.0
    %753 = vmatpush1.msra.mxu0 0.0
    %754 = vmatprep.subr.mxu0 0.0
    %755 = vmatpush1.msra.mxu0 0.0
    %756 = vmatprep.subr.mxu0 0.0
    %757 = vmatpush1.msra.mxu0 0.0
    %758 = vmatprep.subr.mxu0 0.0
    %759 = vmatpush1.msra.mxu0 0.0
    %760 = vmatprep.subr.mxu0 0.0
    %761 = vmatpush1.msra.mxu0 0.0
    %762 = vmatprep.subr.mxu0 0.0
    %763 = vmatpush1.msra.mxu0 0.0
    %764 = vmatprep.subr.mxu0 0.0
    %765 = vmatpush1.msra.mxu0 0.0
    %766 = vmatprep.subr.mxu0 0.0
    %767 = vmatpush1.msra.mxu0 0.0
    %768 = vmatprep.subr.mxu0 0.0
    %769 = vmatpush1.msra.mxu0 0.0
    %770 = vmatprep.subr.mxu0 0.0
    %771 = vmatpush1.msra.mxu0 0.0
    %772 = vmatprep.subr.mxu0 0.0
    %773 = vmatpush1.msra.mxu0 0.0
    %774 = vmatprep.subr.mxu0 0.0
    %775 = vmatpush1.msra.mxu0 0.0
    %776 = vmatprep.subr.mxu0 0.0
    %777 = vmatpush1.msra.mxu0 0.0
    %778 = vmatprep.subr.mxu0 0.0
    %779 = vmatpush1.msra.mxu0 0.0
    %780 = vmatprep.subr.mxu0 0.0
    %781 = vmatpush1.msra.mxu0 0.0
    %782 = vmatprep.subr.mxu0 0.0
    %783 = vmatpush1.msra.mxu0 0.0
    %784 = vmatprep.subr.mxu0 0.0
    %785 = vmatpush1.msra.mxu0 0.0
    %786 = vmatprep.subr.mxu0 0.0
    %787 = vmatpush1.msra.mxu0 0.0
    %788 = vmatprep.subr.mxu0 0.0
    %789 = vmatpush1.msra.mxu0 0.0
    %790 = vmatprep.subr.mxu0 0.0
    %791 = vmatpush1.msra.mxu0 0.0
    %792 = vmatprep.subr.mxu0 0.0
    %793 = vmatpush1.msra.mxu0 0.0
    %794 = vmatprep.subr.mxu0 0.0
    %795 = vmatpush1.msra.mxu0 0.0
    %796 = vmatprep.mubr.f32.mxu0 0.0
    %797 = vmatmul.mubr.f32.gmra.mrb[0].mxu0 %v727
    %v798 = vpop.f32.mrb[0].mxu0
    %v799 = vadd.f32 0.0, %v798
    %v800 = vpop.f32.mrb[0].mxu0
    %801 = vmatprep.mubr.f32.mxu0 0.0
    %802 = vmatmul.mubr.f32.gmra.mrb[0].mxu0 %v730
    %v803 = vpop.f32.mrb[0].mxu0
    %v804 = vadd.f32 0.0, %v803
    %v805 = vpop.f32.mrb[0].mxu0
    %806 = vdwg.mxu0
    %v808 = vsel %vm330, %v518, 0
    %v811 = vsel %vm330, %v523, 0
    %813 = vmatprep.subr.mxu0 0.0
    %814 = vmatpush1.msra.mxu0 %v326
    %815 = vmatprep.subr.mxu0 0.0
    %816 = vmatpush1.msra.mxu0 0.0
    %817 = vmatprep.subr.mxu0 0.0
    %818 = vmatpush1.msra.mxu0 0.0
    %819 = vmatprep.subr.mxu0 0.0
    %820 = vmatpush1.msra.mxu0 0.0
    %821 = vmatprep.subr.mxu0 0.0
    %822 = vmatpush1.msra.mxu0 0.0
    %823 = vmatprep.subr.mxu0 0.0
    %824 = vmatpush1.msra.mxu0 0.0
    %825 = vmatprep.subr.mxu0 0.0
    %826 = vmatpush1.msra.mxu0 0.0
    %827 = vmatprep.subr.mxu0 0.0
    %828 = vmatpush1.msra.mxu0 0.0
    %829 = vmatprep.subr.mxu0 0.0
    %830 = vmatpush1.msra.mxu0 0.0
    %831 = vmatprep.subr.mxu0 0.0
    %832 = vmatpush1.msra.mxu0 0.0
    %833 = vmatprep.subr.mxu0 0.0
    %834 = vmatpush1.msra.mxu0 0.0
    %835 = vmatprep.subr.mxu0 0.0
    %836 = vmatpush1.msra.mxu0 0.0
    %837 = vmatprep.subr.mxu0 0.0
    %838 = vmatpush1.msra.mxu0 0.0
    %839 = vmatprep.subr.mxu0 0.0
    %840 = vmatpush1.msra.mxu0 0.0
    %841 = vmatprep.subr.mxu0 0.0
    %842 = vmatpush1.msra.mxu0 0.0
    %843 = vmatprep.subr.mxu0 0.0
    %844 = vmatpush1.msra.mxu0 0.0
    %845 = vmatprep.subr.mxu0 0.0
    %846 = vmatpush1.msra.mxu0 0.0
    %847 = vmatprep.subr.mxu0 0.0
    %848 = vmatpush1.msra.mxu0 0.0
    %849 = vmatprep.subr.mxu0 0.0
    %850 = vmatpush1.msra.mxu0 0.0
    %851 = vmatprep.subr.mxu0 0.0
    %852 = vmatpush1.msra.mxu0 0.0
    %853 = vmatprep.subr.mxu0 0.0
    %854 = vmatpush1.msra.mxu0 0.0
    %855 = vmatprep.subr.mxu0 0.0
    %856 = vmatpush1.msra.mxu0 0.0
    %857 = vmatprep.subr.mxu0 0.0
    %858 = vmatpush1.msra.mxu0 0.0
    %859 = vmatprep.subr.mxu0 0.0
    %860 = vmatpush1.msra.mxu0 0.0
    %861 = vmatprep.subr.mxu0 0.0
    %862 = vmatpush1.msra.mxu0 0.0
    %863 = vmatprep.subr.mxu0 0.0
    %864 = vmatpush1.msra.mxu0 0.0
    %865 = vmatprep.subr.mxu0 0.0
    %866 = vmatpush1.msra.mxu0 0.0
    %867 = vmatprep.subr.mxu0 0.0
    %868 = vmatpush1.msra.mxu0 0.0
    %869 = vmatprep.subr.mxu0 0.0
    %870 = vmatpush1.msra.mxu0 0.0
    %871 = vmatprep.subr.mxu0 0.0
    %872 = vmatpush1.msra.mxu0 0.0
    %873 = vmatprep.subr.mxu0 0.0
    %874 = vmatpush1.msra.mxu0 0.0
    %875 = vmatprep.subr.mxu0 0.0
    %876 = vmatpush1.msra.mxu0 0.0
    %877 = vmatprep.mubr.f32.mxu0 0.0
    %878 = vmatmul.mubr.f32.gmra.mrb[0].mxu0 %v808
    %v879 = vpop.f32.mrb[0].mxu0
    %v880 = vadd.f32 %v799, %v879
    %v881 = vpop.f32.mrb[0].mxu0
    %882 = vmatprep.mubr.f32.mxu0 0.0
    %883 = vmatmul.mubr.f32.gmra.mrb[0].mxu0 %v811
    %v884 = vpop.f32.mrb[0].mxu0
    %v885 = vadd.f32 %v804, %v884
    %v886 = vpop.f32.mrb[0].mxu0
    %887 = vdwg.mxu0
    %888 = vrot.lane.b32.xlu0 %v318, 112
    %v889 = vpop.permute.xlu0 %888
    %890 = vrot.lane.b32.xlu0 %v323, 112
    %v891 = vpop.permute.xlu0 %890
    %892 = vrot.lane.b32.xlu0 %v226, 112
    %v893 = vpop.permute.xlu0 %892
    %894 = vrot.lane.b32.xlu0 %v231, 112
    %v895 = vpop.permute.xlu0 %894
    %v896 = vsel %vm330, %v889, 0
    %v898 = vsel %vm330, %v891, 0
    %v900 = vsel %vm330, %v893, 0
    %v902 = vsel %vm330, %v895, 0
    %904 = vmatprep.subr.mxu0 0.0
    %905 = vmatpush1.xpose.msra.mxu0 %v900
    %906 = vmatprep.subr.mxu0 0.0
    %907 = vmatpush1.xpose.msra.mxu0 %v902
    %908 = vmatprep.subr.mxu0 0.0
    %909 = vmatpush1.xpose.msra.mxu0 0.0
    %910 = vmatprep.subr.mxu0 0.0
    %911 = vmatpush1.xpose.msra.mxu0 0.0
    %912 = vmatprep.subr.mxu0 0.0
    %913 = vmatpush1.xpose.msra.mxu0 0.0
    %914 = vmatprep.subr.mxu0 0.0
    %915 = vmatpush1.xpose.msra.mxu0 0.0
    %916 = vmatprep.subr.mxu0 0.0
    %917 = vmatpush1.xpose.msra.mxu0 0.0
    %918 = vmatprep.subr.mxu0 0.0
    %919 = vmatpush1.xpose.msra.mxu0 0.0
    %920 = vmatprep.subr.mxu0 0.0
    %921 = vmatpush1.xpose.msra.mxu0 0.0
    %922 = vmatprep.subr.mxu0 0.0
    %923 = vmatpush1.xpose.msra.mxu0 0.0
    %924 = vmatprep.subr.mxu0 0.0
    %925 = vmatpush1.xpose.msra.mxu0 0.0
    %926 = vmatprep.subr.mxu0 0.0
    %927 = vmatpush1.xpose.msra.mxu0 0.0
    %928 = vmatprep.subr.mxu0 0.0
    %929 = vmatpush1.xpose.msra.mxu0 0.0
    %930 = vmatprep.subr.mxu0 0.0
    %931 = vmatpush1.xpose.msra.mxu0 0.0
    %932 = vmatprep.subr.mxu0 0.0
    %933 = vmatpush1.xpose.msra.mxu0 0.0
    %934 = vmatprep.subr.mxu0 0.0
    %935 = vmatpush1.xpose.msra.mxu0 0.0
    %936 = vmatprep.subr.mxu0 0.0
    %937 = vmatpush1.xpose.msra.mxu0 0.0
    %938 = vmatprep.subr.mxu0 0.0
    %939 = vmatpush1.xpose.msra.mxu0 0.0
    %940 = vmatprep.subr.mxu0 0.0
    %941 = vmatpush1.xpose.msra.mxu0 0.0
    %942 = vmatprep.subr.mxu0 0.0
    %943 = vmatpush1.xpose.msra.mxu0 0.0
    %944 = vmatprep.subr.mxu0 0.0
    %945 = vmatpush1.xpose.msra.mxu0 0.0
    %946 = vmatprep.subr.mxu0 0.0
    %947 = vmatpush1.xpose.msra.mxu0 0.0
    %948 = vmatprep.subr.mxu0 0.0
    %949 = vmatpush1.xpose.msra.mxu0 0.0
    %950 = vmatprep.subr.mxu0 0.0
    %951 = vmatpush1.xpose.msra.mxu0 0.0
    %952 = vmatprep.subr.mxu0 0.0
    %953 = vmatpush1.xpose.msra.mxu0 0.0
    %954 = vmatprep.subr.mxu0 0.0
    %955 = vmatpush1.xpose.msra.mxu0 0.0
    %956 = vmatprep.subr.mxu0 0.0
    %957 = vmatpush1.xpose.msra.mxu0 0.0
    %958 = vmatprep.subr.mxu0 0.0
    %959 = vmatpush1.xpose.msra.mxu0 0.0
    %960 = vmatprep.subr.mxu0 0.0
    %961 = vmatpush1.xpose.msra.mxu0 0.0
    %962 = vmatprep.subr.mxu0 0.0
    %963 = vmatpush1.xpose.msra.mxu0 0.0
    %964 = vmatprep.subr.mxu0 0.0
    %965 = vmatpush1.xpose.msra.mxu0 0.0
    %966 = vmatprep.subr.mxu0 0.0
    %967 = vmatpush1.xpose.msra.mxu0 0.0
    %968 = vmatprep.mubr.f32.mxu0 0.0
    %969 = vmatmul.mubr.f32.gmra.mrb[0].mxu0 %v896
    %v970 = vpop.f32.mrb[0].mxu0
    %v971 = vadd.f32 0.0, %v970
    %v972 = vpop.f32.mrb[0].mxu0
    %973 = vmatprep.mubr.f32.mxu0 0.0
    %974 = vmatmul.mubr.f32.gmra.mrb[0].mxu0 %v898
    %v975 = vpop.f32.mrb[0].mxu0
    %v976 = vadd.f32 0.0, %v975
    %v977 = vpop.f32.mrb[0].mxu0
    %978 = vdwg.mxu0
    %v979 = vsel %vm137, -1e+09, %v971
    %v980 = vsel %vm138, -1e+09, %v976
    %v981 = vadd.f32 %v979, %v139
    %v982 = vadd.f32 %v980, %v140
    %v983 = vsel %vm422, %v981, -inf
    %984 = vmax.xlane.f32.xlu0 %v983
    %v985 = vpop.xlane.xlu0 %984
    %v986 = vsel %vm422, %v982, -inf
    %987 = vmax.xlane.f32.xlu0 %v986
    %v988 = vpop.xlane.xlu0 %987
    %v989 = vsub.f32 %v981, %v985
    %v990 = vsub.f32 %v982, %v988
    %v991 = vmul.f32 %v989, 1.442695
    %v992 = vpow.pop %v991
    %v993 = vmul.f32 %v990, 1.442695
    %v994 = vpow.pop %v993
    %v995 = vsel %vm422, %v992, 0.0
    %996 = vadd.xlane.f32.xlu0 %v995
    %v997 = vpop.xlane.xlu0 %996
    %v998 = vsel %vm422, %v994, 0.0
    %999 = vadd.xlane.f32.xlu0 %v998
    %v1000 = vpop.xlane.xlu0 %999
    %v1001 = vrcp.pop %v997
    %v1002 = vrcp.pop %v1000
    %v1003 = vmul.f32 %v992, %v1001
    %v1004 = vmul.f32 %v994, %v1002
    %v1008 = vsel %vm422, %v1003, 0
    %v1011 = vsel %vm422, %v1004, 0
    %1013 = vmatprep.subr.mxu0 0.0
    %1014 = vmatpush1.msra.mxu0 %v893
    %1015 = vmatprep.subr.mxu0 0.0
    %1016 = vmatpush1.msra.mxu0 %v895
    %1017 = vmatprep.subr.mxu0 0.0
    %1018 = vmatpush1.msra.mxu0 0.0
    %1019 = vmatprep.subr.mxu0 0.0
    %1020 = vmatpush1.msra.mxu0 0.0
    %1021 = vmatprep.subr.mxu0 0.0
    %1022 = vmatpush1.msra.mxu0 0.0
    %1023 = vmatprep.subr.mxu0 0.0
    %1024 = vmatpush1.msra.mxu0 0.0
    %1025 = vmatprep.subr.mxu0 0.0
    %1026 = vmatpush1.msra.mxu0 0.0
    %1027 = vmatprep.subr.mxu0 0.0
    %1028 = vmatpush1.msra.mxu0 0.0
    %1029 = vmatprep.subr.mxu0 0.0
    %1030 = vmatpush1.msra.mxu0 0.0
    %1031 = vmatprep.subr.mxu0 0.0
    %1032 = vmatpush1.msra.mxu0 0.0
    %1033 = vmatprep.subr.mxu0 0.0
    %1034 = vmatpush1.msra.mxu0 0.0
    %1035 = vmatprep.subr.mxu0 0.0
    %1036 = vmatpush1.msra.mxu0 0.0
    %1037 = vmatprep.subr.mxu0 0.0
    %1038 = vmatpush1.msra.mxu0 0.0
    %1039 = vmatprep.subr.mxu0 0.0
    %1040 = vmatpush1.msra.mxu0 0.0
    %1041 = vmatprep.subr.mxu0 0.0
    %1042 = vmatpush1.msra.mxu0 0.0
    %1043 = vmatprep.subr.mxu0 0.0
    %1044 = vmatpush1.msra.mxu0 0.0
    %1045 = vmatprep.subr.mxu0 0.0
    %1046 = vmatpush1.msra.mxu0 0.0
    %1047 = vmatprep.subr.mxu0 0.0
    %1048 = vmatpush1.msra.mxu0 0.0
    %1049 = vmatprep.subr.mxu0 0.0
    %1050 = vmatpush1.msra.mxu0 0.0
    %1051 = vmatprep.subr.mxu0 0.0
    %1052 = vmatpush1.msra.mxu0 0.0
    %1053 = vmatprep.subr.mxu0 0.0
    %1054 = vmatpush1.msra.mxu0 0.0
    %1055 = vmatprep.subr.mxu0 0.0
    %1056 = vmatpush1.msra.mxu0 0.0
    %1057 = vmatprep.subr.mxu0 0.0
    %1058 = vmatpush1.msra.mxu0 0.0
    %1059 = vmatprep.subr.mxu0 0.0
    %1060 = vmatpush1.msra.mxu0 0.0
    %1061 = vmatprep.subr.mxu0 0.0
    %1062 = vmatpush1.msra.mxu0 0.0
    %1063 = vmatprep.subr.mxu0 0.0
    %1064 = vmatpush1.msra.mxu0 0.0
    %1065 = vmatprep.subr.mxu0 0.0
    %1066 = vmatpush1.msra.mxu0 0.0
    %1067 = vmatprep.subr.mxu0 0.0
    %1068 = vmatpush1.msra.mxu0 0.0
    %1069 = vmatprep.subr.mxu0 0.0
    %1070 = vmatpush1.msra.mxu0 0.0
    %1071 = vmatprep.subr.mxu0 0.0
    %1072 = vmatpush1.msra.mxu0 0.0
    %1073 = vmatprep.subr.mxu0 0.0
    %1074 = vmatpush1.msra.mxu0 0.0
    %1075 = vmatprep.subr.mxu0 0.0
    %1076 = vmatpush1.msra.mxu0 0.0
    %1077 = vmatprep.mubr.f32.mxu0 0.0
    %1078 = vmatmul.mubr.f32.gmra.mrb[0].mxu0 %v1008
    %v1079 = vpop.f32.mrb[0].mxu0
    %v1080 = vadd.f32 0.0, %v1079
    %v1081 = vpop.f32.mrb[0].mxu0
    %1082 = vmatprep.mubr.f32.mxu0 0.0
    %1083 = vmatmul.mubr.f32.gmra.mrb[0].mxu0 %v1011
    %v1084 = vpop.f32.mrb[0].mxu0
    %v1085 = vadd.f32 0.0, %v1084
    %v1086 = vpop.f32.mrb[0].mxu0
    %1087 = vdwg.mxu0
    %v1089 = vsel %vm330, %v1080, 0
    %v1092 = vsel %vm330, %v1085, 0
    %1094 = vmatprep.subr.mxu0 0.0
    %1095 = vmatpush1.msra.mxu0 %v328
    %1096 = vmatprep.subr.mxu0 0.0
    %1097 = vmatpush1.msra.mxu0 0.0
    %1098 = vmatprep.subr.mxu0 0.0
    %1099 = vmatpush1.msra.mxu0 0.0
    %1100 = vmatprep.subr.mxu0 0.0
    %1101 = vmatpush1.msra.mxu0 0.0
    %1102 = vmatprep.subr.mxu0 0.0
    %1103 = vmatpush1.msra.mxu0 0.0
    %1104 = vmatprep.subr.mxu0 0.0
    %1105 = vmatpush1.msra.mxu0 0.0
    %1106 = vmatprep.subr.mxu0 0.0
    %1107 = vmatpush1.msra.mxu0 0.0
    %1108 = vmatprep.subr.mxu0 0.0
    %1109 = vmatpush1.msra.mxu0 0.0
    %1110 = vmatprep.subr.mxu0 0.0
    %1111 = vmatpush1.msra.mxu0 0.0
    %1112 = vmatprep.subr.mxu0 0.0
    %1113 = vmatpush1.msra.mxu0 0.0
    %1114 = vmatprep.subr.mxu0 0.0
    %1115 = vmatpush1.msra.mxu0 0.0
    %1116 = vmatprep.subr.mxu0 0.0
    %1117 = vmatpush1.msra.mxu0 0.0
    %1118 = vmatprep.subr.mxu0 0.0
    %1119 = vmatpush1.msra.mxu0 0.0
    %1120 = vmatprep.subr.mxu0 0.0
    %1121 = vmatpush1.msra.mxu0 0.0
    %1122 = vmatprep.subr.mxu0 0.0
    %1123 = vmatpush1.msra.mxu0 0.0
    %1124 = vmatprep.subr.mxu0 0.0
    %1125 = vmatpush1.msra.mxu0 0.0
    %1126 = vmatprep.subr.mxu0 0.0
    %1127 = vmatpush1.msra.mxu0 0.0
    %1128 = vmatprep.subr.mxu0 0.0
    %1129 = vmatpush1.msra.mxu0 0.0
    %1130 = vmatprep.subr.mxu0 0.0
    %1131 = vmatpush1.msra.mxu0 0.0
    %1132 = vmatprep.subr.mxu0 0.0
    %1133 = vmatpush1.msra.mxu0 0.0
    %1134 = vmatprep.subr.mxu0 0.0
    %1135 = vmatpush1.msra.mxu0 0.0
    %1136 = vmatprep.subr.mxu0 0.0
    %1137 = vmatpush1.msra.mxu0 0.0
    %1138 = vmatprep.subr.mxu0 0.0
    %1139 = vmatpush1.msra.mxu0 0.0
    %1140 = vmatprep.subr.mxu0 0.0
    %1141 = vmatpush1.msra.mxu0 0.0
    %1142 = vmatprep.subr.mxu0 0.0
    %1143 = vmatpush1.msra.mxu0 0.0
    %1144 = vmatprep.subr.mxu0 0.0
    %1145 = vmatpush1.msra.mxu0 0.0
    %1146 = vmatprep.subr.mxu0 0.0
    %1147 = vmatpush1.msra.mxu0 0.0
    %1148 = vmatprep.subr.mxu0 0.0
    %1149 = vmatpush1.msra.mxu0 0.0
    %1150 = vmatprep.subr.mxu0 0.0
    %1151 = vmatpush1.msra.mxu0 0.0
    %1152 = vmatprep.subr.mxu0 0.0
    %1153 = vmatpush1.msra.mxu0 0.0
    %1154 = vmatprep.subr.mxu0 0.0
    %1155 = vmatpush1.msra.mxu0 0.0
    %1156 = vmatprep.subr.mxu0 0.0
    %1157 = vmatpush1.msra.mxu0 0.0
    %1158 = vmatprep.mubr.f32.mxu0 0.0
    %1159 = vmatmul.mubr.f32.gmra.mrb[0].mxu0 %v1089
    %v1160 = vpop.f32.mrb[0].mxu0
    %v1161 = vadd.f32 0.0, %v1160
    %v1162 = vpop.f32.mrb[0].mxu0
    %1163 = vmatprep.mubr.f32.mxu0 0.0
    %1164 = vmatmul.mubr.f32.gmra.mrb[0].mxu0 %v1092
    %v1165 = vpop.f32.mrb[0].mxu0
    %v1166 = vadd.f32 0.0, %v1165
    %v1167 = vpop.f32.mrb[0].mxu0
    %1168 = vdwg.mxu0
    %v1169 = vadd.f32 %v880, %v1161
    %v1170 = vadd.f32 %v885, %v1166
    %1171 = vrot.lane.b32.xlu0 %v318, 104
    %v1172 = vpop.permute.xlu0 %1171
    %1173 = vrot.lane.b32.xlu0 %v323, 104
    %v1174 = vpop.permute.xlu0 %1173
    %1175 = vrot.lane.b32.xlu0 %v226, 104
    %v1176 = vpop.permute.xlu0 %1175
    %1177 = vrot.lane.b32.xlu0 %v231, 104
    %v1178 = vpop.permute.xlu0 %1177
    %v1179 = vsel %vm330, %v1172, 0
    %v1181 = vsel %vm330, %v1174, 0
    %v1183 = vsel %vm330, %v1176, 0
    %v1185 = vsel %vm330, %v1178, 0
    %1187 = vmatprep.subr.mxu0 0.0
    %1188 = vmatpush1.xpose.msra.mxu0 %v1183
    %1189 = vmatprep.subr.mxu0 0.0
    %1190 = vmatpush1.xpose.msra.mxu0 %v1185
    %1191 = vmatprep.subr.mxu0 0.0
    %1192 = vmatpush1.xpose.msra.mxu0 0.0
    %1193 = vmatprep.subr.mxu0 0.0
    %1194 = vmatpush1.xpose.msra.mxu0 0.0
    %1195 = vmatprep.subr.mxu0 0.0
    %1196 = vmatpush1.xpose.msra.mxu0 0.0
    %1197 = vmatprep.subr.mxu0 0.0
    %1198 = vmatpush1.xpose.msra.mxu0 0.0
    %1199 = vmatprep.subr.mxu0 0.0
    %1200 = vmatpush1.xpose.msra.mxu0 0.0
    %1201 = vmatprep.subr.mxu0 0.0
    %1202 = vmatpush1.xpose.msra.mxu0 0.0
    %1203 = vmatprep.subr.mxu0 0.0
    %1204 = vmatpush1.xpose.msra.mxu0 0.0
    %1205 = vmatprep.subr.mxu0 0.0
    %1206 = vmatpush1.xpose.msra.mxu0 0.0
    %1207 = vmatprep.subr.mxu0 0.0
    %1208 = vmatpush1.xpose.msra.mxu0 0.0
    %1209 = vmatprep.subr.mxu0 0.0
    %1210 = vmatpush1.xpose.msra.mxu0 0.0
    %1211 = vmatprep.subr.mxu0 0.0
    %1212 = vmatpush1.xpose.msra.mxu0 0.0
    %1213 = vmatprep.subr.mxu0 0.0
    %1214 = vmatpush1.xpose.msra.mxu0 0.0
    %1215 = vmatprep.subr.mxu0 0.0
    %1216 = vmatpush1.xpose.msra.mxu0 0.0
    %1217 = vmatprep.subr.mxu0 0.0
    %1218 = vmatpush1.xpose.msra.mxu0 0.0
    %1219 = vmatprep.subr.mxu0 0.0
    %1220 = vmatpush1.xpose.msra.mxu0 0.0
    %1221 = vmatprep.subr.mxu0 0.0
    %1222 = vmatpush1.xpose.msra.mxu0 0.0
    %1223 = vmatprep.subr.mxu0 0.0
    %1224 = vmatpush1.xpose.msra.mxu0 0.0
    %1225 = vmatprep.subr.mxu0 0.0
    %1226 = vmatpush1.xpose.msra.mxu0 0.0
    %1227 = vmatprep.subr.mxu0 0.0
    %1228 = vmatpush1.xpose.msra.mxu0 0.0
    %1229 = vmatprep.subr.mxu0 0.0
    %1230 = vmatpush1.xpose.msra.mxu0 0.0
    %1231 = vmatprep.subr.mxu0 0.0
    %1232 = vmatpush1.xpose.msra.mxu0 0.0
    %1233 = vmatprep.subr.mxu0 0.0
    %1234 = vmatpush1.xpose.msra.mxu0 0.0
    %1235 = vmatprep.subr.mxu0 0.0
    %1236 = vmatpush1.xpose.msra.mxu0 0.0
    %1237 = vmatprep.subr.mxu0 0.0
    %1238 = vmatpush1.xpose.msra.mxu0 0.0
    %1239 = vmatprep.subr.mxu0 0.0
    %1240 = vmatpush1.xpose.msra.mxu0 0.0
    %1241 = vmatprep.subr.mxu0 0.0
    %1242 = vmatpush1.xpose.msra.mxu0 0.0
    %1243 = vmatprep.subr.mxu0 0.0
    %1244 = vmatpush1.xpose.msra.mxu0 0.0
    %1245 = vmatprep.subr.mxu0 0.0
    %1246 = vmatpush1.xpose.msra.mxu0 0.0
    %1247 = vmatprep.subr.mxu0 0.0
    %1248 = vmatpush1.xpose.msra.mxu0 0.0
    %1249 = vmatprep.subr.mxu0 0.0
    %1250 = vmatpush1.xpose.msra.mxu0 0.0
    %1251 = vmatprep.mubr.f32.mxu0 0.0
    %1252 = vmatmul.mubr.f32.gmra.mrb[0].mxu0 %v1179
    %v1253 = vpop.f32.mrb[0].mxu0
    %v1254 = vadd.f32 0.0, %v1253
    %v1255 = vpop.f32.mrb[0].mxu0
    %1256 = vmatprep.mubr.f32.mxu0 0.0
    %1257 = vmatmul.mubr.f32.gmra.mrb[0].mxu0 %v1181
    %v1258 = vpop.f32.mrb[0].mxu0
    %v1259 = vadd.f32 0.0, %v1258
    %v1260 = vpop.f32.mrb[0].mxu0
    %1261 = vdwg.mxu0
    %v1262 = vsel %vm137, -1e+09, %v1254
    %v1263 = vsel %vm138, -1e+09, %v1259
    %v1264 = vadd.f32 %v1262, %v139
    %v1265 = vadd.f32 %v1263, %v140
    %v1266 = vsel %vm422, %v1264, -inf
    %1267 = vmax.xlane.f32.xlu0 %v1266
    %v1268 = vpop.xlane.xlu0 %1267
    %v1269 = vsel %vm422, %v1265, -inf
    %1270 = vmax.xlane.f32.xlu0 %v1269
    %v1271 = vpop.xlane.xlu0 %1270
    %v1272 = vsub.f32 %v1264, %v1268
    %v1273 = vsub.f32 %v1265, %v1271
    %v1274 = vmul.f32 %v1272, 1.442695
    %v1275 = vpow.pop %v1274
    %v1276 = vmul.f32 %v1273, 1.442695
    %v1277 = vpow.pop %v1276
    %v1278 = vsel %vm422, %v1275, 0.0
    %1279 = vadd.xlane.f32.xlu0 %v1278
    %v1280 = vpop.xlane.xlu0 %1279
    %v1281 = vsel %vm422, %v1277, 0.0
    %1282 = vadd.xlane.f32.xlu0 %v1281
    %v1283 = vpop.xlane.xlu0 %1282
    %v1284 = vrcp.pop %v1280
    %v1285 = vrcp.pop %v1283
    %v1286 = vmul.f32 %v1275, %v1284
    %v1287 = vmul.f32 %v1277, %v1285
    %v1291 = vsel %vm422, %v1286, 0
    %v1294 = vsel %vm422, %v1287, 0
    %1296 = vmatprep.subr.mxu0 0.0
    %1297 = vmatpush1.msra.mxu0 %v1176
    %1298 = vmatprep.subr.mxu0 0.0
    %1299 = vmatpush1.msra.mxu0 %v1178
    %1300 = vmatprep.subr.mxu0 0.0
    %1301 = vmatpush1.msra.mxu0 0.0
    %1302 = vmatprep.subr.mxu0 0.0
    %1303 = vmatpush1.msra.mxu0 0.0
    %1304 = vmatprep.subr.mxu0 0.0
    %1305 = vmatpush1.msra.mxu0 0.0
    %1306 = vmatprep.subr.mxu0 0.0
    %1307 = vmatpush1.msra.mxu0 0.0
    %1308 = vmatprep.subr.mxu0 0.0
    %1309 = vmatpush1.msra.mxu0 0.0
    %1310 = vmatprep.subr.mxu0 0.0
    %1311 = vmatpush1.msra.mxu0 0.0
    %1312 = vmatprep.subr.mxu0 0.0
    %1313 = vmatpush1.msra.mxu0 0.0
    %1314 = vmatprep.subr.mxu0 0.0
    %1315 = vmatpush1.msra.mxu0 0.0
    %1316 = vmatprep.subr.mxu0 0.0
    %1317 = vmatpush1.msra.mxu0 0.0
    %1318 = vmatprep.subr.mxu0 0.0
    %1319 = vmatpush1.msra.mxu0 0.0
    %1320 = vmatprep.subr.mxu0 0.0
    %1321 = vmatpush1.msra.mxu0 0.0
    %1322 = vmatprep.subr.mxu0 0.0
    %1323 = vmatpush1.msra.mxu0 0.0
    %1324 = vmatprep.subr.mxu0 0.0
    %1325 = vmatpush1.msra.mxu0 0.0
    %1326 = vmatprep.subr.mxu0 0.0
    %1327 = vmatpush1.msra.mxu0 0.0
    %1328 = vmatprep.subr.mxu0 0.0
    %1329 = vmatpush1.msra.mxu0 0.0
    %1330 = vmatprep.subr.mxu0 0.0
    %1331 = vmatpush1.msra.mxu0 0.0
    %1332 = vmatprep.subr.mxu0 0.0
    %1333 = vmatpush1.msra.mxu0 0.0
    %1334 = vmatprep.subr.mxu0 0.0
    %1335 = vmatpush1.msra.mxu0 0.0
    %1336 = vmatprep.subr.mxu0 0.0
    %1337 = vmatpush1.msra.mxu0 0.0
    %1338 = vmatprep.subr.mxu0 0.0
    %1339 = vmatpush1.msra.mxu0 0.0
    %1340 = vmatprep.subr.mxu0 0.0
    %1341 = vmatpush1.msra.mxu0 0.0
    %1342 = vmatprep.subr.mxu0 0.0
    %1343 = vmatpush1.msra.mxu0 0.0
    %1344 = vmatprep.subr.mxu0 0.0
    %1345 = vmatpush1.msra.mxu0 0.0
    %1346 = vmatprep.subr.mxu0 0.0
    %1347 = vmatpush1.msra.mxu0 0.0
    %1348 = vmatprep.subr.mxu0 0.0
    %1349 = vmatpush1.msra.mxu0 0.0
    %1350 = vmatprep.subr.mxu0 0.0
    %1351 = vmatpush1.msra.mxu0 0.0
    %1352 = vmatprep.subr.mxu0 0.0
    %1353 = vmatpush1.msra.mxu0 0.0
    %1354 = vmatprep.subr.mxu0 0.0
    %1355 = vmatpush1.msra.mxu0 0.0
    %1356 = vmatprep.subr.mxu0 0.0
    %1357 = vmatpush1.msra.mxu0 0.0
    %1358 = vmatprep.subr.mxu0 0.0
    %1359 = vmatpush1.msra.mxu0 0.0
    %1360 = vmatprep.mubr.f32.mxu0 0.0
    %1361 = vmatmul.mubr.f32.gmra.mrb[0].mxu0 %v1291
    %v1362 = vpop.f32.mrb[0].mxu0
    %v1363 = vadd.f32 0.0, %v1362
    %v1364 = vpop.f32.mrb[0].mxu0
    %1365 = vmatprep.mubr.f32.mxu0 0.0
    %1366 = vmatmul.mubr.f32.gmra.mrb[0].mxu0 %v1294
    %v1367 = vpop.f32.mrb[0].mxu0
    %v1368 = vadd.f32 0.0, %v1367
    %v1369 = vpop.f32.mrb[0].mxu0
    %1370 = vdwg.mxu0
    %v1372 = vsel %vm330, %v1363, 0
    %v1375 = vsel %vm330, %v1368, 0
    %1377 = vmatprep.subr.mxu0 0.0
    %1378 = vmatpush1.msra.mxu0 %v329
    %1379 = vmatprep.subr.mxu0 0.0
    %1380 = vmatpush1.msra.mxu0 0.0
    %1381 = vmatprep.subr.mxu0 0.0
    %1382 = vmatpush1.msra.mxu0 0.0
    %1383 = vmatprep.subr.mxu0 0.0
    %1384 = vmatpush1.msra.mxu0 0.0
    %1385 = vmatprep.subr.mxu0 0.0
    %1386 = vmatpush1.msra.mxu0 0.0
    %1387 = vmatprep.subr.mxu0 0.0
    %1388 = vmatpush1.msra.mxu0 0.0
    %1389 = vmatprep.subr.mxu0 0.0
    %1390 = vmatpush1.msra.mxu0 0.0
    %1391 = vmatprep.subr.mxu0 0.0
    %1392 = vmatpush1.msra.mxu0 0.0
    %1393 = vmatprep.subr.mxu0 0.0
    %1394 = vmatpush1.msra.mxu0 0.0
    %1395 = vmatprep.subr.mxu0 0.0
    %1396 = vmatpush1.msra.mxu0 0.0
    %1397 = vmatprep.subr.mxu0 0.0
    %1398 = vmatpush1.msra.mxu0 0.0
    %1399 = vmatprep.subr.mxu0 0.0
    %1400 = vmatpush1.msra.mxu0 0.0
    %1401 = vmatprep.subr.mxu0 0.0
    %1402 = vmatpush1.msra.mxu0 0.0
    %1403 = vmatprep.subr.mxu0 0.0
    %1404 = vmatpush1.msra.mxu0 0.0
    %1405 = vmatprep.subr.mxu0 0.0
    %1406 = vmatpush1.msra.mxu0 0.0
    %1407 = vmatprep.subr.mxu0 0.0
    %1408 = vmatpush1.msra.mxu0 0.0
    %1409 = vmatprep.subr.mxu0 0.0
    %1410 = vmatpush1.msra.mxu0 0.0
    %1411 = vmatprep.subr.mxu0 0.0
    %1412 = vmatpush1.msra.mxu0 0.0
    %1413 = vmatprep.subr.mxu0 0.0
    %1414 = vmatpush1.msra.mxu0 0.0
    %1415 = vmatprep.subr.mxu0 0.0
    %1416 = vmatpush1.msra.mxu0 0.0
    %1417 = vmatprep.subr.mxu0 0.0
    %1418 = vmatpush1.msra.mxu0 0.0
    %1419 = vmatprep.subr.mxu0 0.0
    %1420 = vmatpush1.msra.mxu0 0.0
    %1421 = vmatprep.subr.mxu0 0.0
    %1422 = vmatpush1.msra.mxu0 0.0
    %1423 = vmatprep.subr.mxu0 0.0
    %1424 = vmatpush1.msra.mxu0 0.0
    %1425 = vmatprep.subr.mxu0 0.0
    %1426 = vmatpush1.msra.mxu0 0.0
    %1427 = vmatprep.subr.mxu0 0.0
    %1428 = vmatpush1.msra.mxu0 0.0
    %1429 = vmatprep.subr.mxu0 0.0
    %1430 = vmatpush1.msra.mxu0 0.0
    %1431 = vmatprep.subr.mxu0 0.0
    %1432 = vmatpush1.msra.mxu0 0.0
    %1433 = vmatprep.subr.mxu0 0.0
    %1434 = vmatpush1.msra.mxu0 0.0
    %1435 = vmatprep.subr.mxu0 0.0
    %1436 = vmatpush1.msra.mxu0 0.0
    %1437 = vmatprep.subr.mxu0 0.0
    %1438 = vmatpush1.msra.mxu0 0.0
    %1439 = vmatprep.subr.mxu0 0.0
    %1440 = vmatpush1.msra.mxu0 0.0
    %1441 = vmatprep.mubr.f32.mxu0 0.0
    %1442 = vmatmul.mubr.f32.gmra.mrb[0].mxu0 %v1372
    %v1443 = vpop.f32.mrb[0].mxu0
    %v1444 = vadd.f32 0.0, %v1443
    %v1445 = vpop.f32.mrb[0].mxu0
    %1446 = vmatprep.mubr.f32.mxu0 0.0
    %1447 = vmatmul.mubr.f32.gmra.mrb[0].mxu0 %v1375
    %v1448 = vpop.f32.mrb[0].mxu0
    %v1449 = vadd.f32 0.0, %v1448
    %v1450 = vpop.f32.mrb[0].mxu0
    %1451 = vdwg.mxu0
    %v1452 = vadd.f32 %v1169, %v1444
    %v1453 = vadd.f32 %v1170, %v1449
    %v1454 = vld [vmem:[%s9] sm:$0x1]
    %v1456 = vlaneseq
    %v1457 = vshrl.u32 %v1456, 7
    %v1458 = vsub.s32 0, %v1457
    %v1459 = vrot.slane %v1454, %v1458
    %v1461 = vadd.f32 %v1452, %v1459
    %v1462 = vadd.f32 %v1453, %v1459
    %1463 = vst.msk [vmem:[#allocation14] sm:$0xff] %vm152, %v1461
    %1464 = vst.msk [vmem:[#allocation14 + $0x8] sm:$0xff] %vm152, %v1462
    // Predicated region
    $region70: #{tpu_custom_call.1} parent=1 // pred_check
      _
    $region71: #{tpu_custom_call.1} parent=1 // pred_check_branch
      %1466 = sbr.rel (0) target = $region73
    $region72: #{tpu_custom_call.1} parent=1 // pred_region
      %s1468 = ssub.s32 256, 256
      %1469 = vsyncadd [#allocation4], %s1468
      %s1470 = sshll.u32 [#allocation14], 4
      %s1471 = int_to_ptr.vmem [resolvable:$true] %s1470
      %1476 = dma.vmem_to_hbm [thread:$0]  %s1471, 256, %s10, [#allocation4], 128, 128, 8
    $region73: #{tpu_custom_call.1} parent=1 // pred_fallthru
      _
    // Predicated region
    $region74: #{tpu_custom_call.1} parent=1 // pred_check
      _
    $region75: #{tpu_custom_call.1} parent=1 // pred_check_branch
      %1478 = sbr.rel (0) target = $region77
    $region76: #{tpu_custom_call.1} parent=1 // pred_region
      %1479 = dma.done [#allocation4], 256
    $region77: #{tpu_custom_call.1} parent=1 // pred_fallthru
      _
    %1480 = vsyncpa [#allocation3], 1
    %1481 = vsyncpa [#allocation6], 1
    %1482 = vsyncpa [#allocation9], 1
    %1483 = vsyncpa [#allocation12], 1
    %1484 = vsyncpa [#allocation4], 1

</llo_original>
